<compile_context>
chip_gen: v7x
topology: tpu7x:2x2x1
jax: 0.10.0
libtpu: 0.0.40
codegen_flags: <defaults>
</compile_context>

<pallas_src>
import jax
import jax.numpy as jnp
from jax.experimental import pallas as pl
from jax.experimental.pallas import tpu as pltpu


# ---------------------------------------------------------------------------
# In-kernel helpers (trace-time functions operating on loaded values / refs)
# ---------------------------------------------------------------------------
def _bn_relu(y, gamma, beta, eps=1e-5):
    """Training-mode BatchNorm (stats over rows) + ReLU. y: (M, C) f32."""
    mean = jnp.mean(y, axis=0, keepdims=True)                       # (1, C)
    var = jnp.mean(y * y, axis=0, keepdims=True) - mean * mean      # one pass
    inv = jax.lax.rsqrt(var + eps)
    return jnp.maximum((y - mean) * inv * gamma + beta, 0.0)


def _conv3x3_im2col(pad_ref, w_ref, b_ref, M, Hh, Wh, Cin):
    """3x3 'same' conv as ONE im2col matmul (K = 9*Cin).

    pad_ref: (N, Hh+2, Wh+2, Cin) zero-padded image in VMEM scratch
    w_ref  : (9*Cin, Cout) im2col-flattened weights
    b_ref  : (1, Cout) bias
    returns: (M, Cout) f32, M = N*Hh*Wh
    """
    patches = []
    for kh in range(3):
        for kw in range(3):
            p = pad_ref[:, kh:kh + Hh, kw:kw + Wh, :]    # (N, Hh, Wh, Cin)
            patches.append(p.reshape(M, Cin))
    cols = jnp.concatenate(patches, axis=1)              # (M, 9*Cin)
    y = jnp.dot(cols, w_ref[...], preferred_element_type=jnp.float32)
    return y + b_ref[...]


# ---------------------------------------------------------------------------
# Fused kernel: maxpool + conv1 + BN1 + ReLU + conv2 + BN2 + ReLU
# ---------------------------------------------------------------------------
def _down_kernel(x_ref, w1_ref, b1_ref, g1_ref, be1_ref,
                 w2_ref, b2_ref, g2_ref, be2_ref,
                 o_ref, pad1_ref, pad2_ref):
    # x_ref is the input pre-viewed as (N, Hh, 2, Wh, 2*Cin)
    N, Hh, _, Wh, two_cin = x_ref.shape
    Cin = two_cin // 2
    Cout = o_ref.shape[-1]
    M = N * Hh * Wh

    # ---- MaxPool2d(kernel=2, stride=2): two elementwise maxima, no strides.
    xv = x_ref[...]                                         # (N,Hh,2,Wh,2*Cin)
    vmax = jnp.maximum(xv[:, :, 0], xv[:, :, 1])            # rows   -> (N,Hh,Wh,2*Cin)
    pooled = jnp.maximum(vmax[..., :Cin], vmax[..., Cin:])  # cols   -> (N,Hh,Wh,Cin)

    # ---- conv1 (3x3, 'same') -> BN1 -> ReLU, all in VMEM.
    pad1_ref[...] = jnp.zeros_like(pad1_ref)
    pad1_ref[:, 1:1 + Hh, 1:1 + Wh, :] = pooled
    y1 = _conv3x3_im2col(pad1_ref, w1_ref, b1_ref, M, Hh, Wh, Cin)   # (M,Cout)
    x1 = _bn_relu(y1, g1_ref[...], be1_ref[...])                     # (M,Cout)

    # ---- conv2 (3x3, 'same') -> BN2 -> ReLU.
    pad2_ref[...] = jnp.zeros_like(pad2_ref)
    pad2_ref[:, 1:1 + Hh, 1:1 + Wh, :] = x1.reshape(N, Hh, Wh, Cout)
    y2 = _conv3x3_im2col(pad2_ref, w2_ref, b2_ref, M, Hh, Wh, Cout)  # (M,Cout)
    x2 = _bn_relu(y2, g2_ref[...], be2_ref[...])

    o_ref[...] = x2.reshape(N, Hh, Wh, Cout)


# ---------------------------------------------------------------------------
# Wrapper
# ---------------------------------------------------------------------------
def down_forward(x, params):
    """Down(in_ch, out_ch) forward. x: (N, H, W, Cin) f32, H and W even."""
    N, H, W, Cin = x.shape
    Hh, Wh = H // 2, W // 2
    Cout = params["w1"].shape[-1]

    # Free (copy-less) reshapes: pooling-window view of x and im2col weights.
    x5 = x.reshape(N, Hh, 2, Wh, 2 * Cin)
    w1m = params["w1"].reshape(9 * Cin, Cout)
    w2m = params["w2"].reshape(9 * Cout, Cout)

    return pl.pallas_call(
        _down_kernel,
        out_shape=jax.ShapeDtypeStruct((N, Hh, Wh, Cout), jnp.float32),
        grid_spec=pltpu.PrefetchScalarGridSpec(
            num_scalar_prefetch=0,
            grid=(1,),  # whole problem fits in VMEM; BN needs global N,H,W stats
            in_specs=[
                pl.BlockSpec((N, Hh, 2, Wh, 2 * Cin),
                             lambda i: (0, 0, 0, 0, 0)),
                pl.BlockSpec((9 * Cin, Cout), lambda i: (0, 0)),
                pl.BlockSpec((1, Cout), lambda i: (0, 0)),
                pl.BlockSpec((1, Cout), lambda i: (0, 0)),
                pl.BlockSpec((1, Cout), lambda i: (0, 0)),
                pl.BlockSpec((9 * Cout, Cout), lambda i: (0, 0)),
                pl.BlockSpec((1, Cout), lambda i: (0, 0)),
                pl.BlockSpec((1, Cout), lambda i: (0, 0)),
                pl.BlockSpec((1, Cout), lambda i: (0, 0)),
            ],
            out_specs=pl.BlockSpec((N, Hh, Wh, Cout),
                                   lambda i: (0, 0, 0, 0)),
            scratch_shapes=[
                pltpu.VMEM((N, Hh + 2, Wh + 2, Cin), jnp.float32),
                pltpu.VMEM((N, Hh + 2, Wh + 2, Cout), jnp.float32),
            ],
        ),
        compiler_params=pltpu.CompilerParams(
            dimension_semantics=("arbitrary",)),
        # TODO(synk): for non-toy H/W, tile over H with halos (grid over N,H
        # marked "parallel" for v7x's 2 TCs) and use a two-pass BN reduction.
    )(x5, w1m, params["b1"], params["bn1_g"], params["bn1_b"],
      w2m, params["b2"], params["bn2_g"], params["bn2_b"])


def init_params(key, in_ch, out_ch):
    k1, k2, k3, k4 = jax.random.split(key, 4)
    return {
        "w1": 0.1 * jax.random.normal(k1, (3, 3, in_ch, out_ch), jnp.float32),
        "b1": 0.01 * jax.random.normal(k2, (1, out_ch), jnp.float32),
        "bn1_g": jnp.ones((1, out_ch), jnp.float32),
        "bn1_b": jnp.zeros((1, out_ch), jnp.float32),
        "w2": 0.1 * jax.random.normal(k3, (3, 3, out_ch, out_ch), jnp.float32),
        "b2": 0.01 * jax.random.normal(k4, (1, out_ch), jnp.float32),
        "bn2_g": jnp.ones((1, out_ch), jnp.float32),
        "bn2_b": jnp.zeros((1, out_ch), jnp.float32),
    }


if __name__ == "__main__":
    key = jax.random.PRNGKey(0)
    k_x, k_p = jax.random.split(key)

    N, H, W = 2, 16, 16
    in_ch, out_ch = 4, 8

    x = jax.random.normal(k_x, (N, H, W, in_ch), jnp.float32)   # NHWC
    params = init_params(k_p, in_ch, out_ch)

    fwd = jax.jit(down_forward)
    out = jax.block_until_ready(fwd(x, params))

    assert out.shape == (N, H // 2, W // 2, out_ch), out.shape
    assert out.dtype == jnp.float32
    assert bool(jnp.all(jnp.isfinite(out)))
    print("KERNEL_OK")
</pallas_src>

<mosaic_0001>
module attributes {stable_mosaic.version = 11 : i64} {
  func.func @_down_kernel(%arg0: i32, %arg1: memref<2x8x2x8x8xf32, #tpu.memory_space<vmem>>, %arg2: memref<36x8xf32, #tpu.memory_space<vmem>>, %arg3: memref<1x8xf32, #tpu.memory_space<vmem>>, %arg4: memref<1x8xf32, #tpu.memory_space<vmem>>, %arg5: memref<1x8xf32, #tpu.memory_space<vmem>>, %arg6: memref<72x8xf32, #tpu.memory_space<vmem>>, %arg7: memref<1x8xf32, #tpu.memory_space<vmem>>, %arg8: memref<1x8xf32, #tpu.memory_space<vmem>>, %arg9: memref<1x8xf32, #tpu.memory_space<vmem>>, %arg10: memref<2x8x8x8xf32, #tpu.memory_space<vmem>>, %arg11: memref<2x10x10x4xf32, #tpu.memory_space<vmem>>, %arg12: memref<2x10x10x8xf32, #tpu.memory_space<vmem>>) attributes {dimension_semantics = [#tpu.dimension_semantics<arbitrary>], iteration_bounds = array<i64: 1>, scalar_prefetch = 0 : i64, scratch_operands = 2 : i64, tpu.core_type = #tpu.core_type<tc>, window_params = [{pipeline_mode = #tpu.pipeline_mode<synchronous>, transform_indices = @transform_0, window_bounds = array<i64: 2, 8, 2, 8, 8>}, {pipeline_mode = #tpu.pipeline_mode<synchronous>, transform_indices = @transform_1, window_bounds = array<i64: 36, 8>}, {pipeline_mode = #tpu.pipeline_mode<synchronous>, transform_indices = @transform_2, window_bounds = array<i64: 1, 8>}, {pipeline_mode = #tpu.pipeline_mode<synchronous>, transform_indices = @transform_3, window_bounds = array<i64: 1, 8>}, {pipeline_mode = #tpu.pipeline_mode<synchronous>, transform_indices = @transform_4, window_bounds = array<i64: 1, 8>}, {pipeline_mode = #tpu.pipeline_mode<synchronous>, transform_indices = @transform_5, window_bounds = array<i64: 72, 8>}, {pipeline_mode = #tpu.pipeline_mode<synchronous>, transform_indices = @transform_6, window_bounds = array<i64: 1, 8>}, {pipeline_mode = #tpu.pipeline_mode<synchronous>, transform_indices = @transform_7, window_bounds = array<i64: 1, 8>}, {pipeline_mode = #tpu.pipeline_mode<synchronous>, transform_indices = @transform_8, window_bounds = array<i64: 1, 8>}, {pipeline_mode = #tpu.pipeline_mode<synchronous>, transform_indices = @transform_9, window_bounds = array<i64: 2, 8, 8, 8>}]} {
    %c0 = arith.constant 0 : index
    %c0_0 = arith.constant 0 : index
    %c0_1 = arith.constant 0 : index
    %c0_2 = arith.constant 0 : index
    %c0_3 = arith.constant 0 : index
    %0 = vector.load %arg1[%c0, %c0_0, %c0_1, %c0_2, %c0_3] : memref<2x8x2x8x8xf32, #tpu.memory_space<vmem>>, vector<2x8x2x8x8xf32>
    %1 = vector.extract_strided_slice %0 {offsets = [0, 0, 0, 0, 0], sizes = [2, 8, 1, 8, 8], strides = [1, 1, 1, 1, 1]} : vector<2x8x2x8x8xf32> to vector<2x8x1x8x8xf32>
    %2 = vector.shape_cast %1 : vector<2x8x1x8x8xf32> to vector<2x8x8x8xf32>
    %3 = vector.extract_strided_slice %0 {offsets = [0, 0, 1, 0, 0], sizes = [2, 8, 1, 8, 8], strides = [1, 1, 1, 1, 1]} : vector<2x8x2x8x8xf32> to vector<2x8x1x8x8xf32>
    %4 = vector.shape_cast %3 : vector<2x8x1x8x8xf32> to vector<2x8x8x8xf32>
    %5 = arith.maximumf %2, %4 : vector<2x8x8x8xf32>
    %6 = vector.extract_strided_slice %5 {offsets = [0, 0, 0, 0], sizes = [2, 8, 8, 4], strides = [1, 1, 1, 1]} : vector<2x8x8x8xf32> to vector<2x8x8x4xf32>
    %7 = vector.extract_strided_slice %5 {offsets = [0, 0, 0, 4], sizes = [2, 8, 8, 4], strides = [1, 1, 1, 1]} : vector<2x8x8x8xf32> to vector<2x8x8x4xf32>
    %8 = arith.maximumf %6, %7 : vector<2x8x8x4xf32>
    %cst = arith.constant 0.000000e+00 : f32
    %9 = vector.broadcast %cst : f32 to vector<2x10x10x4xf32>
    %c0_4 = arith.constant 0 : index
    %c0_5 = arith.constant 0 : index
    %c0_6 = arith.constant 0 : index
    %c0_7 = arith.constant 0 : index
    %10 = vector.load %arg11[%c0_4, %c0_5, %c0_6, %c0_7] : memref<2x10x10x4xf32, #tpu.memory_space<vmem>>, vector<2x10x10x4xf32>
    tpu.vector_store %arg11[%c0_4, %c0_5, %c0_6, %c0_7], %9 {strides = array<i32>} : memref<2x10x10x4xf32, #tpu.memory_space<vmem>>, vector<2x10x10x4xf32>,
    %c0_8 = arith.constant 0 : index
    %c1 = arith.constant 1 : index
    %c1_9 = arith.constant 1 : index
    %c0_10 = arith.constant 0 : index
    %11 = vector.load %arg11[%c0_8, %c1, %c1_9, %c0_10] : memref<2x10x10x4xf32, #tpu.memory_space<vmem>>, vector<2x8x8x4xf32>
    tpu.vector_store %arg11[%c0_8, %c1, %c1_9, %c0_10], %8 {strides = array<i32>} : memref<2x10x10x4xf32, #tpu.memory_space<vmem>>, vector<2x8x8x4xf32>,
    %c0_11 = arith.constant 0 : index
    %c0_12 = arith.constant 0 : index
    %c0_13 = arith.constant 0 : index
    %c0_14 = arith.constant 0 : index
    %12 = vector.load %arg11[%c0_11, %c0_12, %c0_13, %c0_14] : memref<2x10x10x4xf32, #tpu.memory_space<vmem>>, vector<2x8x8x4xf32>
    %13 = vector.shape_cast %12 : vector<2x8x8x4xf32> to vector<128x4xf32>
    %c0_15 = arith.constant 0 : index
    %c0_16 = arith.constant 0 : index
    %c1_17 = arith.constant 1 : index
    %c0_18 = arith.constant 0 : index
    %14 = vector.load %arg11[%c0_15, %c0_16, %c1_17, %c0_18] : memref<2x10x10x4xf32, #tpu.memory_space<vmem>>, vector<2x8x8x4xf32>
    %15 = vector.shape_cast %14 : vector<2x8x8x4xf32> to vector<128x4xf32>
    %c0_19 = arith.constant 0 : index
    %c0_20 = arith.constant 0 : index
    %c2 = arith.constant 2 : index
    %c0_21 = arith.constant 0 : index
    %16 = vector.load %arg11[%c0_19, %c0_20, %c2, %c0_21] : memref<2x10x10x4xf32, #tpu.memory_space<vmem>>, vector<2x8x8x4xf32>
    %17 = vector.shape_cast %16 : vector<2x8x8x4xf32> to vector<128x4xf32>
    %c0_22 = arith.constant 0 : index
    %c1_23 = arith.constant 1 : index
    %c0_24 = arith.constant 0 : index
    %c0_25 = arith.constant 0 : index
    %18 = vector.load %arg11[%c0_22, %c1_23, %c0_24, %c0_25] : memref<2x10x10x4xf32, #tpu.memory_space<vmem>>, vector<2x8x8x4xf32>
    %19 = vector.shape_cast %18 : vector<2x8x8x4xf32> to vector<128x4xf32>
    %c0_26 = arith.constant 0 : index
    %c1_27 = arith.constant 1 : index
    %c1_28 = arith.constant 1 : index
    %c0_29 = arith.constant 0 : index
    %20 = vector.load %arg11[%c0_26, %c1_27, %c1_28, %c0_29] : memref<2x10x10x4xf32, #tpu.memory_space<vmem>>, vector<2x8x8x4xf32>
    %21 = vector.shape_cast %20 : vector<2x8x8x4xf32> to vector<128x4xf32>
    %c0_30 = arith.constant 0 : index
    %c1_31 = arith.constant 1 : index
    %c2_32 = arith.constant 2 : index
    %c0_33 = arith.constant 0 : index
    %22 = vector.load %arg11[%c0_30, %c1_31, %c2_32, %c0_33] : memref<2x10x10x4xf32, #tpu.memory_space<vmem>>, vector<2x8x8x4xf32>
    %23 = vector.shape_cast %22 : vector<2x8x8x4xf32> to vector<128x4xf32>
    %c0_34 = arith.constant 0 : index
    %c2_35 = arith.constant 2 : index
    %c0_36 = arith.constant 0 : index
    %c0_37 = arith.constant 0 : index
    %24 = vector.load %arg11[%c0_34, %c2_35, %c0_36, %c0_37] : memref<2x10x10x4xf32, #tpu.memory_space<vmem>>, vector<2x8x8x4xf32>
    %25 = vector.shape_cast %24 : vector<2x8x8x4xf32> to vector<128x4xf32>
    %c0_38 = arith.constant 0 : index
    %c2_39 = arith.constant 2 : index
    %c1_40 = arith.constant 1 : index
    %c0_41 = arith.constant 0 : index
    %26 = vector.load %arg11[%c0_38, %c2_39, %c1_40, %c0_41] : memref<2x10x10x4xf32, #tpu.memory_space<vmem>>, vector<2x8x8x4xf32>
    %27 = vector.shape_cast %26 : vector<2x8x8x4xf32> to vector<128x4xf32>
    %c0_42 = arith.constant 0 : index
    %c2_43 = arith.constant 2 : index
    %c2_44 = arith.constant 2 : index
    %c0_45 = arith.constant 0 : index
    %28 = vector.load %arg11[%c0_42, %c2_43, %c2_44, %c0_45] : memref<2x10x10x4xf32, #tpu.memory_space<vmem>>, vector<2x8x8x4xf32>
    %29 = vector.shape_cast %28 : vector<2x8x8x4xf32> to vector<128x4xf32>
    %30 = tpu.concatenate %13, %15, %17, %19, %21, %23, %25, %27, %29 in 1 : vector<128x4xf32>, vector<128x4xf32>, vector<128x4xf32>, vector<128x4xf32>, vector<128x4xf32>, vector<128x4xf32>, vector<128x4xf32>, vector<128x4xf32>, vector<128x4xf32> -> vector<128x36xf32>
    %c0_46 = arith.constant 0 : index
    %c0_47 = arith.constant 0 : index
    %31 = vector.load %arg2[%c0_46, %c0_47] : memref<36x8xf32, #tpu.memory_space<vmem>>, vector<36x8xf32>
    %cst_48 = arith.constant dense<0.000000e+00> : vector<128x8xf32>
    %32 = tpu.matmul %30, %31, %cst_48 {dimension_numbers = #tpu.dot_dimension_numbers<[1], [0], [0], [1], [0, 0, 1, 1], [], []>} : vector<128x36xf32>, vector<36x8xf32>, vector<128x8xf32> -> vector<128x8xf32>
    %c0_49 = arith.constant 0 : index
    %c0_50 = arith.constant 0 : index
    %33 = vector.load %arg3[%c0_49, %c0_50] : memref<1x8xf32, #tpu.memory_space<vmem>>, vector<1x8xf32>
    %34 = vector.broadcast %33 : vector<1x8xf32> to vector<128x8xf32>
    %35 = arith.addf %32, %34 : vector<128x8xf32>
    %c0_51 = arith.constant 0 : index
    %c0_52 = arith.constant 0 : index
    %36 = vector.load %arg4[%c0_51, %c0_52] : memref<1x8xf32, #tpu.memory_space<vmem>>, vector<1x8xf32>
    %c0_53 = arith.constant 0 : index
    %c0_54 = arith.constant 0 : index
    %37 = vector.load %arg5[%c0_53, %c0_54] : memref<1x8xf32, #tpu.memory_space<vmem>>, vector<1x8xf32>
    %cst_55 = arith.constant dense<0.000000e+00> : vector<8xf32>
    %38 = vector.multi_reduction <add>, %35, %cst_55 [0] : vector<128x8xf32> to vector<8xf32>
    %39 = vector.shape_cast %38 : vector<8xf32> to vector<1x8xf32>
    %cst_56 = arith.constant 1.280000e+02 : f32
    %40 = vector.broadcast %cst_56 : f32 to vector<1x8xf32>
    %41 = arith.divf %39, %40 : vector<1x8xf32>
    %42 = arith.mulf %35, %35 : vector<128x8xf32>
    %cst_57 = arith.constant dense<0.000000e+00> : vector<8xf32>
    %43 = vector.multi_reduction <add>, %42, %cst_57 [0] : vector<128x8xf32> to vector<8xf32>
    %44 = vector.shape_cast %43 : vector<8xf32> to vector<1x8xf32>
    %cst_58 = arith.constant 1.280000e+02 : f32
    %45 = vector.broadcast %cst_58 : f32 to vector<1x8xf32>
    %46 = arith.divf %44, %45 : vector<1x8xf32>
    %47 = arith.mulf %41, %41 : vector<1x8xf32>
    %48 = arith.subf %46, %47 : vector<1x8xf32>
    %cst_59 = arith.constant 9.99999974E-6 : f32
    %49 = vector.broadcast %cst_59 : f32 to vector<1x8xf32>
    %50 = arith.addf %48, %49 : vector<1x8xf32>
    %51 = math.rsqrt %50 : vector<1x8xf32>
    %52 = vector.broadcast %41 : vector<1x8xf32> to vector<128x8xf32>
    %53 = arith.subf %35, %52 : vector<128x8xf32>
    %54 = vector.broadcast %51 : vector<1x8xf32> to vector<128x8xf32>
    %55 = arith.mulf %53, %54 : vector<128x8xf32>
    %56 = vector.broadcast %36 : vector<1x8xf32> to vector<128x8xf32>
    %57 = arith.mulf %55, %56 : vector<128x8xf32>
    %58 = vector.broadcast %37 : vector<1x8xf32> to vector<128x8xf32>
    %59 = arith.addf %57, %58 : vector<128x8xf32>
    %cst_60 = arith.constant 0.000000e+00 : f32
    %60 = vector.broadcast %cst_60 : f32 to vector<128x8xf32>
    %61 = arith.maximumf %59, %60 : vector<128x8xf32>
    %cst_61 = arith.constant 0.000000e+00 : f32
    %62 = vector.broadcast %cst_61 : f32 to vector<2x10x10x8xf32>
    %c0_62 = arith.constant 0 : index
    %c0_63 = arith.constant 0 : index
    %c0_64 = arith.constant 0 : index
    %c0_65 = arith.constant 0 : index
    %63 = vector.load %arg12[%c0_62, %c0_63, %c0_64, %c0_65] : memref<2x10x10x8xf32, #tpu.memory_space<vmem>>, vector<2x10x10x8xf32>
    tpu.vector_store %arg12[%c0_62, %c0_63, %c0_64, %c0_65], %62 {strides = array<i32>} : memref<2x10x10x8xf32, #tpu.memory_space<vmem>>, vector<2x10x10x8xf32>,
    %64 = vector.shape_cast %61 : vector<128x8xf32> to vector<2x8x8x8xf32>
    %c0_66 = arith.constant 0 : index
    %c1_67 = arith.constant 1 : index
    %c1_68 = arith.constant 1 : index
    %c0_69 = arith.constant 0 : index
    %65 = vector.load %arg12[%c0_66, %c1_67, %c1_68, %c0_69] : memref<2x10x10x8xf32, #tpu.memory_space<vmem>>, vector<2x8x8x8xf32>
    tpu.vector_store %arg12[%c0_66, %c1_67, %c1_68, %c0_69], %64 {strides = array<i32>} : memref<2x10x10x8xf32, #tpu.memory_space<vmem>>, vector<2x8x8x8xf32>,
    %c0_70 = arith.constant 0 : index
    %c0_71 = arith.constant 0 : index
    %c0_72 = arith.constant 0 : index
    %c0_73 = arith.constant 0 : index
    %66 = vector.load %arg12[%c0_70, %c0_71, %c0_72, %c0_73] : memref<2x10x10x8xf32, #tpu.memory_space<vmem>>, vector<2x8x8x8xf32>
    %67 = vector.shape_cast %66 : vector<2x8x8x8xf32> to vector<128x8xf32>
    %c0_74 = arith.constant 0 : index
    %c0_75 = arith.constant 0 : index
    %c1_76 = arith.constant 1 : index
    %c0_77 = arith.constant 0 : index
    %68 = vector.load %arg12[%c0_74, %c0_75, %c1_76, %c0_77] : memref<2x10x10x8xf32, #tpu.memory_space<vmem>>, vector<2x8x8x8xf32>
    %69 = vector.shape_cast %68 : vector<2x8x8x8xf32> to vector<128x8xf32>
    %c0_78 = arith.constant 0 : index
    %c0_79 = arith.constant 0 : index
    %c2_80 = arith.constant 2 : index
    %c0_81 = arith.constant 0 : index
    %70 = vector.load %arg12[%c0_78, %c0_79, %c2_80, %c0_81] : memref<2x10x10x8xf32, #tpu.memory_space<vmem>>, vector<2x8x8x8xf32>
    %71 = vector.shape_cast %70 : vector<2x8x8x8xf32> to vector<128x8xf32>
    %c0_82 = arith.constant 0 : index
    %c1_83 = arith.constant 1 : index
    %c0_84 = arith.constant 0 : index
    %c0_85 = arith.constant 0 : index
    %72 = vector.load %arg12[%c0_82, %c1_83, %c0_84, %c0_85] : memref<2x10x10x8xf32, #tpu.memory_space<vmem>>, vector<2x8x8x8xf32>
    %73 = vector.shape_cast %72 : vector<2x8x8x8xf32> to vector<128x8xf32>
    %c0_86 = arith.constant 0 : index
    %c1_87 = arith.constant 1 : index
    %c1_88 = arith.constant 1 : index
    %c0_89 = arith.constant 0 : index
    %74 = vector.load %arg12[%c0_86, %c1_87, %c1_88, %c0_89] : memref<2x10x10x8xf32, #tpu.memory_space<vmem>>, vector<2x8x8x8xf32>
    %75 = vector.shape_cast %74 : vector<2x8x8x8xf32> to vector<128x8xf32>
    %c0_90 = arith.constant 0 : index
    %c1_91 = arith.constant 1 : index
    %c2_92 = arith.constant 2 : index
    %c0_93 = arith.constant 0 : index
    %76 = vector.load %arg12[%c0_90, %c1_91, %c2_92, %c0_93] : memref<2x10x10x8xf32, #tpu.memory_space<vmem>>, vector<2x8x8x8xf32>
    %77 = vector.shape_cast %76 : vector<2x8x8x8xf32> to vector<128x8xf32>
    %c0_94 = arith.constant 0 : index
    %c2_95 = arith.constant 2 : index
    %c0_96 = arith.constant 0 : index
    %c0_97 = arith.constant 0 : index
    %78 = vector.load %arg12[%c0_94, %c2_95, %c0_96, %c0_97] : memref<2x10x10x8xf32, #tpu.memory_space<vmem>>, vector<2x8x8x8xf32>
    %79 = vector.shape_cast %78 : vector<2x8x8x8xf32> to vector<128x8xf32>
    %c0_98 = arith.constant 0 : index
    %c2_99 = arith.constant 2 : index
    %c1_100 = arith.constant 1 : index
    %c0_101 = arith.constant 0 : index
    %80 = vector.load %arg12[%c0_98, %c2_99, %c1_100, %c0_101] : memref<2x10x10x8xf32, #tpu.memory_space<vmem>>, vector<2x8x8x8xf32>
    %81 = vector.shape_cast %80 : vector<2x8x8x8xf32> to vector<128x8xf32>
    %c0_102 = arith.constant 0 : index
    %c2_103 = arith.constant 2 : index
    %c2_104 = arith.constant 2 : index
    %c0_105 = arith.constant 0 : index
    %82 = vector.load %arg12[%c0_102, %c2_103, %c2_104, %c0_105] : memref<2x10x10x8xf32, #tpu.memory_space<vmem>>, vector<2x8x8x8xf32>
    %83 = vector.shape_cast %82 : vector<2x8x8x8xf32> to vector<128x8xf32>
    %84 = tpu.concatenate %67, %69, %71, %73, %75, %77, %79, %81, %83 in 1 : vector<128x8xf32>, vector<128x8xf32>, vector<128x8xf32>, vector<128x8xf32>, vector<128x8xf32>, vector<128x8xf32>, vector<128x8xf32>, vector<128x8xf32>, vector<128x8xf32> -> vector<128x72xf32>
    %c0_106 = arith.constant 0 : index
    %c0_107 = arith.constant 0 : index
    %85 = vector.load %arg6[%c0_106, %c0_107] : memref<72x8xf32, #tpu.memory_space<vmem>>, vector<72x8xf32>
    %cst_108 = arith.constant dense<0.000000e+00> : vector<128x8xf32>
    %86 = tpu.matmul %84, %85, %cst_108 {dimension_numbers = #tpu.dot_dimension_numbers<[1], [0], [0], [1], [0, 0, 1, 1], [], []>} : vector<128x72xf32>, vector<72x8xf32>, vector<128x8xf32> -> vector<128x8xf32>
    %c0_109 = arith.constant 0 : index
    %c0_110 = arith.constant 0 : index
    %87 = vector.load %arg7[%c0_109, %c0_110] : memref<1x8xf32, #tpu.memory_space<vmem>>, vector<1x8xf32>
    %88 = vector.broadcast %87 : vector<1x8xf32> to vector<128x8xf32>
    %89 = arith.addf %86, %88 : vector<128x8xf32>
    %c0_111 = arith.constant 0 : index
    %c0_112 = arith.constant 0 : index
    %90 = vector.load %arg8[%c0_111, %c0_112] : memref<1x8xf32, #tpu.memory_space<vmem>>, vector<1x8xf32>
    %c0_113 = arith.constant 0 : index
    %c0_114 = arith.constant 0 : index
    %91 = vector.load %arg9[%c0_113, %c0_114] : memref<1x8xf32, #tpu.memory_space<vmem>>, vector<1x8xf32>
    %cst_115 = arith.constant dense<0.000000e+00> : vector<8xf32>
    %92 = vector.multi_reduction <add>, %89, %cst_115 [0] : vector<128x8xf32> to vector<8xf32>
    %93 = vector.shape_cast %92 : vector<8xf32> to vector<1x8xf32>
    %cst_116 = arith.constant 1.280000e+02 : f32
    %94 = vector.broadcast %cst_116 : f32 to vector<1x8xf32>
    %95 = arith.divf %93, %94 : vector<1x8xf32>
    %96 = arith.mulf %89, %89 : vector<128x8xf32>
    %cst_117 = arith.constant dense<0.000000e+00> : vector<8xf32>
    %97 = vector.multi_reduction <add>, %96, %cst_117 [0] : vector<128x8xf32> to vector<8xf32>
    %98 = vector.shape_cast %97 : vector<8xf32> to vector<1x8xf32>
    %cst_118 = arith.constant 1.280000e+02 : f32
    %99 = vector.broadcast %cst_118 : f32 to vector<1x8xf32>
    %100 = arith.divf %98, %99 : vector<1x8xf32>
    %101 = arith.mulf %95, %95 : vector<1x8xf32>
    %102 = arith.subf %100, %101 : vector<1x8xf32>
    %cst_119 = arith.constant 9.99999974E-6 : f32
    %103 = vector.broadcast %cst_119 : f32 to vector<1x8xf32>
    %104 = arith.addf %102, %103 : vector<1x8xf32>
    %105 = math.rsqrt %104 : vector<1x8xf32>
    %106 = vector.broadcast %95 : vector<1x8xf32> to vector<128x8xf32>
    %107 = arith.subf %89, %106 : vector<128x8xf32>
    %108 = vector.broadcast %105 : vector<1x8xf32> to vector<128x8xf32>
    %109 = arith.mulf %107, %108 : vector<128x8xf32>
    %110 = vector.broadcast %90 : vector<1x8xf32> to vector<128x8xf32>
    %111 = arith.mulf %109, %110 : vector<128x8xf32>
    %112 = vector.broadcast %91 : vector<1x8xf32> to vector<128x8xf32>
    %113 = arith.addf %111, %112 : vector<128x8xf32>
    %cst_120 = arith.constant 0.000000e+00 : f32
    %114 = vector.broadcast %cst_120 : f32 to vector<128x8xf32>
    %115 = arith.maximumf %113, %114 : vector<128x8xf32>
    %116 = vector.shape_cast %115 : vector<128x8xf32> to vector<2x8x8x8xf32>
    %c0_121 = arith.constant 0 : index
    %c0_122 = arith.constant 0 : index
    %c0_123 = arith.constant 0 : index
    %c0_124 = arith.constant 0 : index
    %117 = vector.load %arg10[%c0_121, %c0_122, %c0_123, %c0_124] : memref<2x8x8x8xf32, #tpu.memory_space<vmem>>, vector<2x8x8x8xf32>
    tpu.vector_store %arg10[%c0_121, %c0_122, %c0_123, %c0_124], %116 {strides = array<i32>} : memref<2x8x8x8xf32, #tpu.memory_space<vmem>>, vector<2x8x8x8xf32>,
    return
  }
  func.func @transform_0(%arg0: i32) -> (i32, i32, i32, i32, i32) {
    %c0_i32 = arith.constant 0 : i32
    %c0_i32_0 = arith.constant 0 : i32
    %c0_i32_1 = arith.constant 0 : i32
    %c0_i32_2 = arith.constant 0 : i32
    %c0_i32_3 = arith.constant 0 : i32
    %c0_i32_4 = arith.constant 0 : i32
    return %c0_i32, %c0_i32_0, %c0_i32_1, %c0_i32_2, %c0_i32_3 : i32, i32, i32, i32, i32
  }
  func.func @transform_1(%arg0: i32) -> (i32, i32) {
    %c0_i32 = arith.constant 0 : i32
    %c0_i32_0 = arith.constant 0 : i32
    %c0_i32_1 = arith.constant 0 : i32
    return %c0_i32, %c0_i32_0 : i32, i32
  }
  func.func @transform_2(%arg0: i32) -> (i32, i32) {
    %c0_i32 = arith.constant 0 : i32
    %c0_i32_0 = arith.constant 0 : i32
    %c0_i32_1 = arith.constant 0 : i32
    return %c0_i32, %c0_i32_0 : i32, i32
  }
  func.func @transform_3(%arg0: i32) -> (i32, i32) {
    %c0_i32 = arith.constant 0 : i32
    %c0_i32_0 = arith.constant 0 : i32
    %c0_i32_1 = arith.constant 0 : i32
    return %c0_i32, %c0_i32_0 : i32, i32
  }
  func.func @transform_4(%arg0: i32) -> (i32, i32) {
    %c0_i32 = arith.constant 0 : i32
    %c0_i32_0 = arith.constant 0 : i32
    %c0_i32_1 = arith.constant 0 : i32
    return %c0_i32, %c0_i32_0 : i32, i32
  }
  func.func @transform_5(%arg0: i32) -> (i32, i32) {
    %c0_i32 = arith.constant 0 : i32
    %c0_i32_0 = arith.constant 0 : i32
    %c0_i32_1 = arith.constant 0 : i32
    return %c0_i32, %c0_i32_0 : i32, i32
  }
  func.func @transform_6(%arg0: i32) -> (i32, i32) {
    %c0_i32 = arith.constant 0 : i32
    %c0_i32_0 = arith.constant 0 : i32
    %c0_i32_1 = arith.constant 0 : i32
    return %c0_i32, %c0_i32_0 : i32, i32
  }
  func.func @transform_7(%arg0: i32) -> (i32, i32) {
    %c0_i32 = arith.constant 0 : i32
    %c0_i32_0 = arith.constant 0 : i32
    %c0_i32_1 = arith.constant 0 : i32
    return %c0_i32, %c0_i32_0 : i32, i32
  }
  func.func @transform_8(%arg0: i32) -> (i32, i32) {
    %c0_i32 = arith.constant 0 : i32
    %c0_i32_0 = arith.constant 0 : i32
    %c0_i32_1 = arith.constant 0 : i32
    return %c0_i32, %c0_i32_0 : i32, i32
  }
  func.func @transform_9(%arg0: i32) -> (i32, i32, i32, i32) {
    %c0_i32 = arith.constant 0 : i32
    %c0_i32_0 = arith.constant 0 : i32
    %c0_i32_1 = arith.constant 0 : i32
    %c0_i32_2 = arith.constant 0 : i32
    %c0_i32_3 = arith.constant 0 : i32
    return %c0_i32, %c0_i32_0, %c0_i32_1, %c0_i32_2 : i32, i32, i32, i32
  }
}

</mosaic_0001>

<llo_original>
// kernel: down_forward.1
$region0: #{down_forward.1}
  #allocation0 [shape = 'u32[]', space=smem, size = 0x4, offset = 0x4, fixed_abs, tag = 'smem constant byte address 0x4 - core index']
  #allocation1 [shape = 'u32[144,128]{1,0:T(1,128)}', space=vmem, size = 0x12000, scoped, tag = 'internal scratch']
  #allocation2 [shape = 'f32[2,10,10,4]{3,2,1,0:T(8,128)}', space=vmem, size = 0x28000, scoped, tag = 'scratch operand']
  #allocation3 [shape = 'f32[2,10,10,8]{3,2,1,0:T(8,128)}', space=vmem, size = 0x28000, scoped, tag = 'scratch operand']
  %s0 = inlined_call_operand.vmem [shape: f32[2,8,2,8,8], index: 0, kind: input, shape index: {}]
  %s1 = inlined_call_operand.vmem [shape: f32[36,8], index: 1, kind: input, shape index: {}]
  %s2 = inlined_call_operand.vmem [shape: f32[1,8], index: 2, kind: input, shape index: {}]
  %s3 = inlined_call_operand.vmem [shape: f32[1,8], index: 3, kind: input, shape index: {}]
  %s4 = inlined_call_operand.vmem [shape: f32[1,8], index: 4, kind: input, shape index: {}]
  %s5 = inlined_call_operand.vmem [shape: f32[72,8], index: 5, kind: input, shape index: {}]
  %s6 = inlined_call_operand.vmem [shape: f32[1,8], index: 6, kind: input, shape index: {}]
  %s7 = inlined_call_operand.vmem [shape: f32[1,8], index: 7, kind: input, shape index: {}]
  %s8 = inlined_call_operand.vmem [shape: f32[1,8], index: 8, kind: input, shape index: {}]
  %s9 = inlined_call_operand.hbm [shape: f32[2,8,8,8], index: 9, kind: output, shape index: {}]
  %s10 = sld [smem:[#allocation0]]
  $region46: #{down_forward.1} parent=0
    _
  %s12 = ssub.s32 1, %s10
  %s13 = scalar_select 0, %s12, %s10
  $region1: #{down_forward.1} parent=0
    #allocation4 [shape = 'u8[65536]{0}', space=vmem, size = 0x10000, scoped, tag = 'output window, operand 0, single buffered']
    #allocation5 [shape = 's32[1]{0}', space=sflag, size = 0x4, scoped, tag = 'scoped memory for down_forward.1']
    %14 = vsyncpa [#allocation5], 0
    // Predicated region
    $region2: #{down_forward.1} parent=1 // pred_check
      _
    $region3: #{down_forward.1} parent=1 // pred_check_branch
      %16 = sbr.rel (0) target = $region5
    $region4: #{down_forward.1} parent=1 // pred_region
      _
    $region5: #{down_forward.1} parent=1 // pred_fallthru
      _
    // Predicated region
    $region6: #{down_forward.1} parent=1 // pred_check
      _
    $region7: #{down_forward.1} parent=1 // pred_check_branch
      %18 = sbr.rel (0) target = $region9
    $region8: #{down_forward.1} parent=1 // pred_region
      _
    $region9: #{down_forward.1} parent=1 // pred_fallthru
      _
    // Predicated region
    $region10: #{down_forward.1} parent=1 // pred_check
      _
    $region11: #{down_forward.1} parent=1 // pred_check_branch
      %20 = sbr.rel (0) target = $region13
    $region12: #{down_forward.1} parent=1 // pred_region
      _
    $region13: #{down_forward.1} parent=1 // pred_fallthru
      _
    // Predicated region
    $region14: #{down_forward.1} parent=1 // pred_check
      _
    $region15: #{down_forward.1} parent=1 // pred_check_branch
      %22 = sbr.rel (0) target = $region17
    $region16: #{down_forward.1} parent=1 // pred_region
      _
    $region17: #{down_forward.1} parent=1 // pred_fallthru
      _
    // Predicated region
    $region18: #{down_forward.1} parent=1 // pred_check
      _
    $region19: #{down_forward.1} parent=1 // pred_check_branch
      %24 = sbr.rel (0) target = $region21
    $region20: #{down_forward.1} parent=1 // pred_region
      _
    $region21: #{down_forward.1} parent=1 // pred_fallthru
      _
    // Predicated region
    $region22: #{down_forward.1} parent=1 // pred_check
      _
    $region23: #{down_forward.1} parent=1 // pred_check_branch
      %26 = sbr.rel (0) target = $region25
    $region24: #{down_forward.1} parent=1 // pred_region
      _
    $region25: #{down_forward.1} parent=1 // pred_fallthru
      _
    // Predicated region
    $region26: #{down_forward.1} parent=1 // pred_check
      _
    $region27: #{down_forward.1} parent=1 // pred_check_branch
      %28 = sbr.rel (0) target = $region29
    $region28: #{down_forward.1} parent=1 // pred_region
      _
    $region29: #{down_forward.1} parent=1 // pred_fallthru
      _
    // Predicated region
    $region30: #{down_forward.1} parent=1 // pred_check
      _
    $region31: #{down_forward.1} parent=1 // pred_check_branch
      %30 = sbr.rel (0) target = $region33
    $region32: #{down_forward.1} parent=1 // pred_region
      _
    $region33: #{down_forward.1} parent=1 // pred_fallthru
      _
    // Predicated region
    $region34: #{down_forward.1} parent=1 // pred_check
      _
    $region35: #{down_forward.1} parent=1 // pred_check_branch
      %32 = sbr.rel (0) target = $region37
    $region36: #{down_forward.1} parent=1 // pred_region
      _
    $region37: #{down_forward.1} parent=1 // pred_fallthru
      _
    %v33 = vld [vmem:[%s0] sm:$0xff]
    %v34 = vld [vmem:[%s0 + $0x8] sm:$0xff]
    %v35 = vld [vmem:[%s0 + $0x10] sm:$0xff]
    %v36 = vld [vmem:[%s0 + $0x18] sm:$0xff]
    %v37 = vld [vmem:[%s0 + $0x20] sm:$0xff]
    %v38 = vld [vmem:[%s0 + $0x28] sm:$0xff]
    %v39 = vld [vmem:[%s0 + $0x30] sm:$0xff]
    %v40 = vld [vmem:[%s0 + $0x38] sm:$0xff]
    %v41 = vld [vmem:[%s0 + $0x40] sm:$0xff]
    %v42 = vld [vmem:[%s0 + $0x48] sm:$0xff]
    %v43 = vld [vmem:[%s0 + $0x50] sm:$0xff]
    %v44 = vld [vmem:[%s0 + $0x58] sm:$0xff]
    %v45 = vld [vmem:[%s0 + $0x60] sm:$0xff]
    %v46 = vld [vmem:[%s0 + $0x68] sm:$0xff]
    %v47 = vld [vmem:[%s0 + $0x70] sm:$0xff]
    %v48 = vld [vmem:[%s0 + $0x78] sm:$0xff]
    %v49 = vld [vmem:[%s0 + $0x80] sm:$0xff]
    %v50 = vld [vmem:[%s0 + $0x88] sm:$0xff]
    %v51 = vld [vmem:[%s0 + $0x90] sm:$0xff]
    %v52 = vld [vmem:[%s0 + $0x98] sm:$0xff]
    %v53 = vld [vmem:[%s0 + $0xa0] sm:$0xff]
    %v54 = vld [vmem:[%s0 + $0xa8] sm:$0xff]
    %v55 = vld [vmem:[%s0 + $0xb0] sm:$0xff]
    %v56 = vld [vmem:[%s0 + $0xb8] sm:$0xff]
    %v57 = vld [vmem:[%s0 + $0xc0] sm:$0xff]
    %v58 = vld [vmem:[%s0 + $0xc8] sm:$0xff]
    %v59 = vld [vmem:[%s0 + $0xd0] sm:$0xff]
    %v60 = vld [vmem:[%s0 + $0xd8] sm:$0xff]
    %v61 = vld [vmem:[%s0 + $0xe0] sm:$0xff]
    %v62 = vld [vmem:[%s0 + $0xe8] sm:$0xff]
    %v63 = vld [vmem:[%s0 + $0xf0] sm:$0xff]
    %v64 = vld [vmem:[%s0 + $0xf8] sm:$0xff]
    %v65 = vmax.f32 %v33, %v34
    %v66 = vmax.f32 %v35, %v36
    %v67 = vmax.f32 %v37, %v38
    %v68 = vmax.f32 %v39, %v40
    %v69 = vmax.f32 %v41, %v42
    %v70 = vmax.f32 %v43, %v44
    %v71 = vmax.f32 %v45, %v46
    %v72 = vmax.f32 %v47, %v48
    %v73 = vmax.f32 %v49, %v50
    %v74 = vmax.f32 %v51, %v52
    %v75 = vmax.f32 %v53, %v54
    %v76 = vmax.f32 %v55, %v56
    %v77 = vmax.f32 %v57, %v58
    %v78 = vmax.f32 %v59, %v60
    %v79 = vmax.f32 %v61, %v62
    %v80 = vmax.f32 %v63, %v64
    %97 = vrot.lane.b32.xlu0 %v65, 124
    %v98 = vpop.permute.xlu0 %97
    %99 = vrot.lane.b32.xlu0 %v66, 124
    %v100 = vpop.permute.xlu0 %99
    %101 = vrot.lane.b32.xlu0 %v67, 124
    %v102 = vpop.permute.xlu0 %101
    %103 = vrot.lane.b32.xlu0 %v68, 124
    %v104 = vpop.permute.xlu0 %103
    %105 = vrot.lane.b32.xlu0 %v69, 124
    %v106 = vpop.permute.xlu0 %105
    %107 = vrot.lane.b32.xlu0 %v70, 124
    %v108 = vpop.permute.xlu0 %107
    %109 = vrot.lane.b32.xlu0 %v71, 124
    %v110 = vpop.permute.xlu0 %109
    %111 = vrot.lane.b32.xlu0 %v72, 124
    %v112 = vpop.permute.xlu0 %111
    %113 = vrot.lane.b32.xlu0 %v73, 124
    %v114 = vpop.permute.xlu0 %113
    %115 = vrot.lane.b32.xlu0 %v74, 124
    %v116 = vpop.permute.xlu0 %115
    %117 = vrot.lane.b32.xlu0 %v75, 124
    %v118 = vpop.permute.xlu0 %117
    %119 = vrot.lane.b32.xlu0 %v76, 124
    %v120 = vpop.permute.xlu0 %119
    %121 = vrot.lane.b32.xlu0 %v77, 124
    %v122 = vpop.permute.xlu0 %121
    %123 = vrot.lane.b32.xlu0 %v78, 124
    %v124 = vpop.permute.xlu0 %123
    %125 = vrot.lane.b32.xlu0 %v79, 124
    %v126 = vpop.permute.xlu0 %125
    %127 = vrot.lane.b32.xlu0 %v80, 124
    %v128 = vpop.permute.xlu0 %127
    %v145 = vmax.f32 %v65, %v98
    %v146 = vmax.f32 %v66, %v100
    %v147 = vmax.f32 %v67, %v102
    %v148 = vmax.f32 %v68, %v104
    %v149 = vmax.f32 %v69, %v106
    %v150 = vmax.f32 %v70, %v108
    %v151 = vmax.f32 %v71, %v110
    %v152 = vmax.f32 %v72, %v112
    %v153 = vmax.f32 %v73, %v114
    %v154 = vmax.f32 %v74, %v116
    %v155 = vmax.f32 %v75, %v118
    %v156 = vmax.f32 %v76, %v120
    %v157 = vmax.f32 %v77, %v122
    %v158 = vmax.f32 %v78, %v124
    %v159 = vmax.f32 %v79, %v126
    %v160 = vmax.f32 %v80, %v128
    %vm161 = vcmask 31744
    %162 = vst.msk [vmem:[#allocation2] sm:$0xff] %vm161, 0.0
    %vm163 = vcmask 25600
    %164 = vst.msk [vmem:[#allocation2 + $0x8] sm:$0x3] %vm163, 0.0
    %165 = vst.msk [vmem:[#allocation2 + $0x10] sm:$0xff] %vm161, 0.0
    %166 = vst.msk [vmem:[#allocation2 + $0x18] sm:$0x3] %vm163, 0.0
    %167 = vst.msk [vmem:[#allocation2 + $0x20] sm:$0xff] %vm161, 0.0
    %168 = vst.msk [vmem:[#allocation2 + $0x28] sm:$0x3] %vm163, 0.0
    %169 = vst.msk [vmem:[#allocation2 + $0x30] sm:$0xff] %vm161, 0.0
    %170 = vst.msk [vmem:[#allocation2 + $0x38] sm:$0x3] %vm163, 0.0
    %171 = vst.msk [vmem:[#allocation2 + $0x40] sm:$0xff] %vm161, 0.0
    %172 = vst.msk [vmem:[#allocation2 + $0x48] sm:$0x3] %vm163, 0.0
    %173 = vst.msk [vmem:[#allocation2 + $0x50] sm:$0xff] %vm161, 0.0
    %174 = vst.msk [vmem:[#allocation2 + $0x58] sm:$0x3] %vm163, 0.0
    %175 = vst.msk [vmem:[#allocation2 + $0x60] sm:$0xff] %vm161, 0.0
    %176 = vst.msk [vmem:[#allocation2 + $0x68] sm:$0x3] %vm163, 0.0
    %177 = vst.msk [vmem:[#allocation2 + $0x70] sm:$0xff] %vm161, 0.0
    %178 = vst.msk [vmem:[#allocation2 + $0x78] sm:$0x3] %vm163, 0.0
    %179 = vst.msk [vmem:[#allocation2 + $0x80] sm:$0xff] %vm161, 0.0
    %180 = vst.msk [vmem:[#allocation2 + $0x88] sm:$0x3] %vm163, 0.0
    %181 = vst.msk [vmem:[#allocation2 + $0x90] sm:$0xff] %vm161, 0.0
    %182 = vst.msk [vmem:[#allocation2 + $0x98] sm:$0x3] %vm163, 0.0
    %183 = vst.msk [vmem:[#allocation2 + $0xa0] sm:$0xff] %vm161, 0.0
    %184 = vst.msk [vmem:[#allocation2 + $0xa8] sm:$0x3] %vm163, 0.0
    %185 = vst.msk [vmem:[#allocation2 + $0xb0] sm:$0xff] %vm161, 0.0
    %186 = vst.msk [vmem:[#allocation2 + $0xb8] sm:$0x3] %vm163, 0.0
    %187 = vst.msk [vmem:[#allocation2 + $0xc0] sm:$0xff] %vm161, 0.0
    %188 = vst.msk [vmem:[#allocation2 + $0xc8] sm:$0x3] %vm163, 0.0
    %189 = vst.msk [vmem:[#allocation2 + $0xd0] sm:$0xff] %vm161, 0.0
    %190 = vst.msk [vmem:[#allocation2 + $0xd8] sm:$0x3] %vm163, 0.0
    %191 = vst.msk [vmem:[#allocation2 + $0xe0] sm:$0xff] %vm161, 0.0
    %192 = vst.msk [vmem:[#allocation2 + $0xe8] sm:$0x3] %vm163, 0.0
    %193 = vst.msk [vmem:[#allocation2 + $0xf0] sm:$0xff] %vm161, 0.0
    %194 = vst.msk [vmem:[#allocation2 + $0xf8] sm:$0x3] %vm163, 0.0
    %195 = vst.msk [vmem:[#allocation2 + $0x100] sm:$0xff] %vm161, 0.0
    %196 = vst.msk [vmem:[#allocation2 + $0x108] sm:$0x3] %vm163, 0.0
    %197 = vst.msk [vmem:[#allocation2 + $0x110] sm:$0xff] %vm161, 0.0
    %198 = vst.msk [vmem:[#allocation2 + $0x118] sm:$0x3] %vm163, 0.0
    %199 = vst.msk [vmem:[#allocation2 + $0x120] sm:$0xff] %vm161, 0.0
    %200 = vst.msk [vmem:[#allocation2 + $0x128] sm:$0x3] %vm163, 0.0
    %201 = vst.msk [vmem:[#allocation2 + $0x130] sm:$0xff] %vm161, 0.0
    %202 = vst.msk [vmem:[#allocation2 + $0x138] sm:$0x3] %vm163, 0.0
    %s203 = scalar_lea.vmem [#allocation2], 16
    %204 = vst.msk [vmem:[%s203 + $0x1] sm:$0xff] %vm161, %v145
    %205 = vst.msk [vmem:[%s203 + $0x11] sm:$0xff] %vm161, %v146
    %206 = vst.msk [vmem:[%s203 + $0x21] sm:$0xff] %vm161, %v147
    %207 = vst.msk [vmem:[%s203 + $0x31] sm:$0xff] %vm161, %v148
    %208 = vst.msk [vmem:[%s203 + $0x41] sm:$0xff] %vm161, %v149
    %209 = vst.msk [vmem:[%s203 + $0x51] sm:$0xff] %vm161, %v150
    %210 = vst.msk [vmem:[%s203 + $0x61] sm:$0xff] %vm161, %v151
    %211 = vst.msk [vmem:[%s203 + $0x71] sm:$0xff] %vm161, %v152
    %212 = vst.msk [vmem:[%s203 + $0xa1] sm:$0xff] %vm161, %v153
    %213 = vst.msk [vmem:[%s203 + $0xb1] sm:$0xff] %vm161, %v154
    %214 = vst.msk [vmem:[%s203 + $0xc1] sm:$0xff] %vm161, %v155
    %215 = vst.msk [vmem:[%s203 + $0xd1] sm:$0xff] %vm161, %v156
    %216 = vst.msk [vmem:[%s203 + $0xe1] sm:$0xff] %vm161, %v157
    %217 = vst.msk [vmem:[%s203 + $0xf1] sm:$0xff] %vm161, %v158
    %218 = vst.msk [vmem:[%s203 + $0x101] sm:$0xff] %vm161, %v159
    %219 = vst.msk [vmem:[%s203 + $0x111] sm:$0xff] %vm161, %v160
    %v220 = vld [vmem:[#allocation2] sm:$0xff]
    %v221 = vld [vmem:[#allocation2 + $0x10] sm:$0xff]
    %v222 = vld [vmem:[#allocation2 + $0x20] sm:$0xff]
    %v223 = vld [vmem:[#allocation2 + $0x30] sm:$0xff]
    %v224 = vld [vmem:[#allocation2 + $0x40] sm:$0xff]
    %v225 = vld [vmem:[#allocation2 + $0x50] sm:$0xff]
    %v226 = vld [vmem:[#allocation2 + $0x60] sm:$0xff]
    %v227 = vld [vmem:[#allocation2 + $0x70] sm:$0xff]
    %v228 = vld [vmem:[#allocation2 + $0xa0] sm:$0xff]
    %v229 = vld [vmem:[#allocation2 + $0xb0] sm:$0xff]
    %v230 = vld [vmem:[#allocation2 + $0xc0] sm:$0xff]
    %v231 = vld [vmem:[#allocation2 + $0xd0] sm:$0xff]
    %v232 = vld [vmem:[#allocation2 + $0xe0] sm:$0xff]
    %v233 = vld [vmem:[#allocation2 + $0xf0] sm:$0xff]
    %v234 = vld [vmem:[#allocation2 + $0x100] sm:$0xff]
    %v235 = vld [vmem:[#allocation2 + $0x110] sm:$0xff]
    %v236 = vld [vmem:[#allocation2 + $0x1] sm:$0xff]
    %v237 = vld [vmem:[#allocation2 + $0x11] sm:$0xff]
    %v238 = vld [vmem:[#allocation2 + $0x21] sm:$0xff]
    %v239 = vld [vmem:[#allocation2 + $0x31] sm:$0xff]
    %v240 = vld [vmem:[#allocation2 + $0x41] sm:$0xff]
    %v241 = vld [vmem:[#allocation2 + $0x51] sm:$0xff]
    %v242 = vld [vmem:[#allocation2 + $0x61] sm:$0xff]
    %v243 = vld [vmem:[#allocation2 + $0x71] sm:$0xff]
    %v244 = vld [vmem:[#allocation2 + $0xa1] sm:$0xff]
    %v245 = vld [vmem:[#allocation2 + $0xb1] sm:$0xff]
    %v246 = vld [vmem:[#allocation2 + $0xc1] sm:$0xff]
    %v247 = vld [vmem:[#allocation2 + $0xd1] sm:$0xff]
    %v248 = vld [vmem:[#allocation2 + $0xe1] sm:$0xff]
    %v249 = vld [vmem:[#allocation2 + $0xf1] sm:$0xff]
    %v250 = vld [vmem:[#allocation2 + $0x101] sm:$0xff]
    %v251 = vld [vmem:[#allocation2 + $0x111] sm:$0xff]
    %v252 = vld [vmem:[#allocation2 + $0x2] sm:$0xff]
    %v253 = vld [vmem:[#allocation2 + $0x12] sm:$0xff]
    %v254 = vld [vmem:[#allocation2 + $0x22] sm:$0xff]
    %v255 = vld [vmem:[#allocation2 + $0x32] sm:$0xff]
    %v256 = vld [vmem:[#allocation2 + $0x42] sm:$0xff]
    %v257 = vld [vmem:[#allocation2 + $0x52] sm:$0xff]
    %v258 = vld [vmem:[#allocation2 + $0x62] sm:$0xff]
    %v259 = vld [vmem:[#allocation2 + $0x72] sm:$0xff]
    %v260 = vld [vmem:[#allocation2 + $0xa2] sm:$0xff]
    %v261 = vld [vmem:[#allocation2 + $0xb2] sm:$0xff]
    %v262 = vld [vmem:[#allocation2 + $0xc2] sm:$0xff]
    %v263 = vld [vmem:[#allocation2 + $0xd2] sm:$0xff]
    %v264 = vld [vmem:[#allocation2 + $0xe2] sm:$0xff]
    %v265 = vld [vmem:[#allocation2 + $0xf2] sm:$0xff]
    %v266 = vld [vmem:[#allocation2 + $0x102] sm:$0xff]
    %v267 = vld [vmem:[#allocation2 + $0x112] sm:$0xff]
    %v268 = vld [vmem:[%s203] sm:$0xff]
    %v269 = vld [vmem:[%s203 + $0x10] sm:$0xff]
    %v270 = vld [vmem:[%s203 + $0x20] sm:$0xff]
    %v271 = vld [vmem:[%s203 + $0x30] sm:$0xff]
    %v272 = vld [vmem:[%s203 + $0x40] sm:$0xff]
    %v273 = vld [vmem:[%s203 + $0x50] sm:$0xff]
    %v274 = vld [vmem:[%s203 + $0x60] sm:$0xff]
    %v275 = vld [vmem:[%s203 + $0x70] sm:$0xff]
    %v276 = vld [vmem:[%s203 + $0xa0] sm:$0xff]
    %v277 = vld [vmem:[%s203 + $0xb0] sm:$0xff]
    %v278 = vld [vmem:[%s203 + $0xc0] sm:$0xff]
    %v279 = vld [vmem:[%s203 + $0xd0] sm:$0xff]
    %v280 = vld [vmem:[%s203 + $0xe0] sm:$0xff]
    %v281 = vld [vmem:[%s203 + $0xf0] sm:$0xff]
    %v282 = vld [vmem:[%s203 + $0x100] sm:$0xff]
    %v283 = vld [vmem:[%s203 + $0x110] sm:$0xff]
    %v284 = vld [vmem:[%s203 + $0x1] sm:$0xff]
    %v285 = vld [vmem:[%s203 + $0x11] sm:$0xff]
    %v286 = vld [vmem:[%s203 + $0x21] sm:$0xff]
    %v287 = vld [vmem:[%s203 + $0x31] sm:$0xff]
    %v288 = vld [vmem:[%s203 + $0x41] sm:$0xff]
    %v289 = vld [vmem:[%s203 + $0x51] sm:$0xff]
    %v290 = vld [vmem:[%s203 + $0x61] sm:$0xff]
    %v291 = vld [vmem:[%s203 + $0x71] sm:$0xff]
    %v292 = vld [vmem:[%s203 + $0xa1] sm:$0xff]
    %v293 = vld [vmem:[%s203 + $0xb1] sm:$0xff]
    %v294 = vld [vmem:[%s203 + $0xc1] sm:$0xff]
    %v295 = vld [vmem:[%s203 + $0xd1] sm:$0xff]
    %v296 = vld [vmem:[%s203 + $0xe1] sm:$0xff]
    %v297 = vld [vmem:[%s203 + $0xf1] sm:$0xff]
    %v298 = vld [vmem:[%s203 + $0x101] sm:$0xff]
    %v299 = vld [vmem:[%s203 + $0x111] sm:$0xff]
    %v300 = vld [vmem:[%s203 + $0x2] sm:$0xff]
    %v301 = vld [vmem:[%s203 + $0x12] sm:$0xff]
    %v302 = vld [vmem:[%s203 + $0x22] sm:$0xff]
    %v303 = vld [vmem:[%s203 + $0x32] sm:$0xff]
    %v304 = vld [vmem:[%s203 + $0x42] sm:$0xff]
    %v305 = vld [vmem:[%s203 + $0x52] sm:$0xff]
    %v306 = vld [vmem:[%s203 + $0x62] sm:$0xff]
    %v307 = vld [vmem:[%s203 + $0x72] sm:$0xff]
    %v308 = vld [vmem:[%s203 + $0xa2] sm:$0xff]
    %v309 = vld [vmem:[%s203 + $0xb2] sm:$0xff]
    %v310 = vld [vmem:[%s203 + $0xc2] sm:$0xff]
    %v311 = vld [vmem:[%s203 + $0xd2] sm:$0xff]
    %v312 = vld [vmem:[%s203 + $0xe2] sm:$0xff]
    %v313 = vld [vmem:[%s203 + $0xf2] sm:$0xff]
    %v314 = vld [vmem:[%s203 + $0x102] sm:$0xff]
    %v315 = vld [vmem:[%s203 + $0x112] sm:$0xff]
    %s316 = scalar_lea.vmem [#allocation2], 32
    %v317 = vld [vmem:[%s316] sm:$0xff]
    %v318 = vld [vmem:[%s316 + $0x10] sm:$0xff]
    %v319 = vld [vmem:[%s316 + $0x20] sm:$0xff]
    %v320 = vld [vmem:[%s316 + $0x30] sm:$0xff]
    %v321 = vld [vmem:[%s316 + $0x40] sm:$0xff]
    %v322 = vld [vmem:[%s316 + $0x50] sm:$0xff]
    %v323 = vld [vmem:[%s316 + $0x60] sm:$0xff]
    %v324 = vld [vmem:[%s316 + $0x70] sm:$0xff]
    %v325 = vld [vmem:[%s316 + $0xa0] sm:$0xff]
    %v326 = vld [vmem:[%s316 + $0xb0] sm:$0xff]
    %v327 = vld [vmem:[%s316 + $0xc0] sm:$0xff]
    %v328 = vld [vmem:[%s316 + $0xd0] sm:$0xff]
    %v329 = vld [vmem:[%s316 + $0xe0] sm:$0xff]
    %v330 = vld [vmem:[%s316 + $0xf0] sm:$0xff]
    %v331 = vld [vmem:[%s316 + $0x100] sm:$0xff]
    %v332 = vld [vmem:[%s316 + $0x110] sm:$0xff]
    %v333 = vld [vmem:[%s316 + $0x1] sm:$0xff]
    %v334 = vld [vmem:[%s316 + $0x11] sm:$0xff]
    %v335 = vld [vmem:[%s316 + $0x21] sm:$0xff]
    %v336 = vld [vmem:[%s316 + $0x31] sm:$0xff]
    %v337 = vld [vmem:[%s316 + $0x41] sm:$0xff]
    %v338 = vld [vmem:[%s316 + $0x51] sm:$0xff]
    %v339 = vld [vmem:[%s316 + $0x61] sm:$0xff]
    %v340 = vld [vmem:[%s316 + $0x71] sm:$0xff]
    %v341 = vld [vmem:[%s316 + $0xa1] sm:$0xff]
    %v342 = vld [vmem:[%s316 + $0xb1] sm:$0xff]
    %v343 = vld [vmem:[%s316 + $0xc1] sm:$0xff]
    %v344 = vld [vmem:[%s316 + $0xd1] sm:$0xff]
    %v345 = vld [vmem:[%s316 + $0xe1] sm:$0xff]
    %v346 = vld [vmem:[%s316 + $0xf1] sm:$0xff]
    %v347 = vld [vmem:[%s316 + $0x101] sm:$0xff]
    %v348 = vld [vmem:[%s316 + $0x111] sm:$0xff]
    %v349 = vld [vmem:[%s316 + $0x2] sm:$0xff]
    %v350 = vld [vmem:[%s316 + $0x12] sm:$0xff]
    %v351 = vld [vmem:[%s316 + $0x22] sm:$0xff]
    %v352 = vld [vmem:[%s316 + $0x32] sm:$0xff]
    %v353 = vld [vmem:[%s316 + $0x42] sm:$0xff]
    %v354 = vld [vmem:[%s316 + $0x52] sm:$0xff]
    %v355 = vld [vmem:[%s316 + $0x62] sm:$0xff]
    %v356 = vld [vmem:[%s316 + $0x72] sm:$0xff]
    %v357 = vld [vmem:[%s316 + $0xa2] sm:$0xff]
    %v358 = vld [vmem:[%s316 + $0xb2] sm:$0xff]
    %v359 = vld [vmem:[%s316 + $0xc2] sm:$0xff]
    %v360 = vld [vmem:[%s316 + $0xd2] sm:$0xff]
    %v361 = vld [vmem:[%s316 + $0xe2] sm:$0xff]
    %v362 = vld [vmem:[%s316 + $0xf2] sm:$0xff]
    %v363 = vld [vmem:[%s316 + $0x102] sm:$0xff]
    %v364 = vld [vmem:[%s316 + $0x112] sm:$0xff]
    %381 = vrot.lane.b32.xlu0 %v236, 4
    %v382 = vpop.permute.xlu0 %381
    %383 = vrot.lane.b32.xlu0 %v237, 4
    %v384 = vpop.permute.xlu0 %383
    %385 = vrot.lane.b32.xlu0 %v238, 4
    %v386 = vpop.permute.xlu0 %385
    %387 = vrot.lane.b32.xlu0 %v239, 4
    %v388 = vpop.permute.xlu0 %387
    %389 = vrot.lane.b32.xlu0 %v240, 4
    %v390 = vpop.permute.xlu0 %389
    %391 = vrot.lane.b32.xlu0 %v241, 4
    %v392 = vpop.permute.xlu0 %391
    %393 = vrot.lane.b32.xlu0 %v242, 4
    %v394 = vpop.permute.xlu0 %393
    %395 = vrot.lane.b32.xlu0 %v243, 4
    %v396 = vpop.permute.xlu0 %395
    %397 = vrot.lane.b32.xlu0 %v244, 4
    %v398 = vpop.permute.xlu0 %397
    %399 = vrot.lane.b32.xlu0 %v245, 4
    %v400 = vpop.permute.xlu0 %399
    %401 = vrot.lane.b32.xlu0 %v246, 4
    %v402 = vpop.permute.xlu0 %401
    %403 = vrot.lane.b32.xlu0 %v247, 4
    %v404 = vpop.permute.xlu0 %403
    %405 = vrot.lane.b32.xlu0 %v248, 4
    %v406 = vpop.permute.xlu0 %405
    %407 = vrot.lane.b32.xlu0 %v249, 4
    %v408 = vpop.permute.xlu0 %407
    %409 = vrot.lane.b32.xlu0 %v250, 4
    %v410 = vpop.permute.xlu0 %409
    %411 = vrot.lane.b32.xlu0 %v251, 4
    %v412 = vpop.permute.xlu0 %411
    %445 = vrot.lane.b32.xlu0 %v252, 8
    %v446 = vpop.permute.xlu0 %445
    %447 = vrot.lane.b32.xlu0 %v253, 8
    %v448 = vpop.permute.xlu0 %447
    %449 = vrot.lane.b32.xlu0 %v254, 8
    %v450 = vpop.permute.xlu0 %449
    %451 = vrot.lane.b32.xlu0 %v255, 8
    %v452 = vpop.permute.xlu0 %451
    %453 = vrot.lane.b32.xlu0 %v256, 8
    %v454 = vpop.permute.xlu0 %453
    %455 = vrot.lane.b32.xlu0 %v257, 8
    %v456 = vpop.permute.xlu0 %455
    %457 = vrot.lane.b32.xlu0 %v258, 8
    %v458 = vpop.permute.xlu0 %457
    %459 = vrot.lane.b32.xlu0 %v259, 8
    %v460 = vpop.permute.xlu0 %459
    %461 = vrot.lane.b32.xlu0 %v260, 8
    %v462 = vpop.permute.xlu0 %461
    %463 = vrot.lane.b32.xlu0 %v261, 8
    %v464 = vpop.permute.xlu0 %463
    %465 = vrot.lane.b32.xlu0 %v262, 8
    %v466 = vpop.permute.xlu0 %465
    %467 = vrot.lane.b32.xlu0 %v263, 8
    %v468 = vpop.permute.xlu0 %467
    %469 = vrot.lane.b32.xlu0 %v264, 8
    %v470 = vpop.permute.xlu0 %469
    %471 = vrot.lane.b32.xlu0 %v265, 8
    %v472 = vpop.permute.xlu0 %471
    %473 = vrot.lane.b32.xlu0 %v266, 8
    %v474 = vpop.permute.xlu0 %473
    %475 = vrot.lane.b32.xlu0 %v267, 8
    %v476 = vpop.permute.xlu0 %475
    %509 = vrot.lane.b32.xlu0 %v268, 12
    %v510 = vpop.permute.xlu0 %509
    %511 = vrot.lane.b32.xlu0 %v269, 12
    %v512 = vpop.permute.xlu0 %511
    %513 = vrot.lane.b32.xlu0 %v270, 12
    %v514 = vpop.permute.xlu0 %513
    %515 = vrot.lane.b32.xlu0 %v271, 12
    %v516 = vpop.permute.xlu0 %515
    %517 = vrot.lane.b32.xlu0 %v272, 12
    %v518 = vpop.permute.xlu0 %517
    %519 = vrot.lane.b32.xlu0 %v273, 12
    %v520 = vpop.permute.xlu0 %519
    %521 = vrot.lane.b32.xlu0 %v274, 12
    %v522 = vpop.permute.xlu0 %521
    %523 = vrot.lane.b32.xlu0 %v275, 12
    %v524 = vpop.permute.xlu0 %523
    %525 = vrot.lane.b32.xlu0 %v276, 12
    %v526 = vpop.permute.xlu0 %525
    %527 = vrot.lane.b32.xlu0 %v277, 12
    %v528 = vpop.permute.xlu0 %527
    %529 = vrot.lane.b32.xlu0 %v278, 12
    %v530 = vpop.permute.xlu0 %529
    %531 = vrot.lane.b32.xlu0 %v279, 12
    %v532 = vpop.permute.xlu0 %531
    %533 = vrot.lane.b32.xlu0 %v280, 12
    %v534 = vpop.permute.xlu0 %533
    %535 = vrot.lane.b32.xlu0 %v281, 12
    %v536 = vpop.permute.xlu0 %535
    %537 = vrot.lane.b32.xlu0 %v282, 12
    %v538 = vpop.permute.xlu0 %537
    %539 = vrot.lane.b32.xlu0 %v283, 12
    %v540 = vpop.permute.xlu0 %539
    %573 = vrot.lane.b32.xlu0 %v284, 16
    %v574 = vpop.permute.xlu0 %573
    %575 = vrot.lane.b32.xlu0 %v285, 16
    %v576 = vpop.permute.xlu0 %575
    %577 = vrot.lane.b32.xlu0 %v286, 16
    %v578 = vpop.permute.xlu0 %577
    %579 = vrot.lane.b32.xlu0 %v287, 16
    %v580 = vpop.permute.xlu0 %579
    %581 = vrot.lane.b32.xlu0 %v288, 16
    %v582 = vpop.permute.xlu0 %581
    %583 = vrot.lane.b32.xlu0 %v289, 16
    %v584 = vpop.permute.xlu0 %583
    %585 = vrot.lane.b32.xlu0 %v290, 16
    %v586 = vpop.permute.xlu0 %585
    %587 = vrot.lane.b32.xlu0 %v291, 16
    %v588 = vpop.permute.xlu0 %587
    %589 = vrot.lane.b32.xlu0 %v292, 16
    %v590 = vpop.permute.xlu0 %589
    %591 = vrot.lane.b32.xlu0 %v293, 16
    %v592 = vpop.permute.xlu0 %591
    %593 = vrot.lane.b32.xlu0 %v294, 16
    %v594 = vpop.permute.xlu0 %593
    %595 = vrot.lane.b32.xlu0 %v295, 16
    %v596 = vpop.permute.xlu0 %595
    %597 = vrot.lane.b32.xlu0 %v296, 16
    %v598 = vpop.permute.xlu0 %597
    %599 = vrot.lane.b32.xlu0 %v297, 16
    %v600 = vpop.permute.xlu0 %599
    %601 = vrot.lane.b32.xlu0 %v298, 16
    %v602 = vpop.permute.xlu0 %601
    %603 = vrot.lane.b32.xlu0 %v299, 16
    %v604 = vpop.permute.xlu0 %603
    %637 = vrot.lane.b32.xlu0 %v300, 20
    %v638 = vpop.permute.xlu0 %637
    %639 = vrot.lane.b32.xlu0 %v301, 20
    %v640 = vpop.permute.xlu0 %639
    %641 = vrot.lane.b32.xlu0 %v302, 20
    %v642 = vpop.permute.xlu0 %641
    %643 = vrot.lane.b32.xlu0 %v303, 20
    %v644 = vpop.permute.xlu0 %643
    %645 = vrot.lane.b32.xlu0 %v304, 20
    %v646 = vpop.permute.xlu0 %645
    %647 = vrot.lane.b32.xlu0 %v305, 20
    %v648 = vpop.permute.xlu0 %647
    %649 = vrot.lane.b32.xlu0 %v306, 20
    %v650 = vpop.permute.xlu0 %649
    %651 = vrot.lane.b32.xlu0 %v307, 20
    %v652 = vpop.permute.xlu0 %651
    %653 = vrot.lane.b32.xlu0 %v308, 20
    %v654 = vpop.permute.xlu0 %653
    %655 = vrot.lane.b32.xlu0 %v309, 20
    %v656 = vpop.permute.xlu0 %655
    %657 = vrot.lane.b32.xlu0 %v310, 20
    %v658 = vpop.permute.xlu0 %657
    %659 = vrot.lane.b32.xlu0 %v311, 20
    %v660 = vpop.permute.xlu0 %659
    %661 = vrot.lane.b32.xlu0 %v312, 20
    %v662 = vpop.permute.xlu0 %661
    %663 = vrot.lane.b32.xlu0 %v313, 20
    %v664 = vpop.permute.xlu0 %663
    %665 = vrot.lane.b32.xlu0 %v314, 20
    %v666 = vpop.permute.xlu0 %665
    %667 = vrot.lane.b32.xlu0 %v315, 20
    %v668 = vpop.permute.xlu0 %667
    %701 = vrot.lane.b32.xlu0 %v317, 24
    %v702 = vpop.permute.xlu0 %701
    %703 = vrot.lane.b32.xlu0 %v318, 24
    %v704 = vpop.permute.xlu0 %703
    %705 = vrot.lane.b32.xlu0 %v319, 24
    %v706 = vpop.permute.xlu0 %705
    %707 = vrot.lane.b32.xlu0 %v320, 24
    %v708 = vpop.permute.xlu0 %707
    %709 = vrot.lane.b32.xlu0 %v321, 24
    %v710 = vpop.permute.xlu0 %709
    %711 = vrot.lane.b32.xlu0 %v322, 24
    %v712 = vpop.permute.xlu0 %711
    %713 = vrot.lane.b32.xlu0 %v323, 24
    %v714 = vpop.permute.xlu0 %713
    %715 = vrot.lane.b32.xlu0 %v324, 24
    %v716 = vpop.permute.xlu0 %715
    %717 = vrot.lane.b32.xlu0 %v325, 24
    %v718 = vpop.permute.xlu0 %717
    %719 = vrot.lane.b32.xlu0 %v326, 24
    %v720 = vpop.permute.xlu0 %719
    %721 = vrot.lane.b32.xlu0 %v327, 24
    %v722 = vpop.permute.xlu0 %721
    %723 = vrot.lane.b32.xlu0 %v328, 24
    %v724 = vpop.permute.xlu0 %723
    %725 = vrot.lane.b32.xlu0 %v329, 24
    %v726 = vpop.permute.xlu0 %725
    %727 = vrot.lane.b32.xlu0 %v330, 24
    %v728 = vpop.permute.xlu0 %727
    %729 = vrot.lane.b32.xlu0 %v331, 24
    %v730 = vpop.permute.xlu0 %729
    %731 = vrot.lane.b32.xlu0 %v332, 24
    %v732 = vpop.permute.xlu0 %731
    %765 = vrot.lane.b32.xlu0 %v333, 28
    %v766 = vpop.permute.xlu0 %765
    %767 = vrot.lane.b32.xlu0 %v334, 28
    %v768 = vpop.permute.xlu0 %767
    %769 = vrot.lane.b32.xlu0 %v335, 28
    %v770 = vpop.permute.xlu0 %769
    %771 = vrot.lane.b32.xlu0 %v336, 28
    %v772 = vpop.permute.xlu0 %771
    %773 = vrot.lane.b32.xlu0 %v337, 28
    %v774 = vpop.permute.xlu0 %773
    %775 = vrot.lane.b32.xlu0 %v338, 28
    %v776 = vpop.permute.xlu0 %775
    %777 = vrot.lane.b32.xlu0 %v339, 28
    %v778 = vpop.permute.xlu0 %777
    %779 = vrot.lane.b32.xlu0 %v340, 28
    %v780 = vpop.permute.xlu0 %779
    %781 = vrot.lane.b32.xlu0 %v341, 28
    %v782 = vpop.permute.xlu0 %781
    %783 = vrot.lane.b32.xlu0 %v342, 28
    %v784 = vpop.permute.xlu0 %783
    %785 = vrot.lane.b32.xlu0 %v343, 28
    %v786 = vpop.permute.xlu0 %785
    %787 = vrot.lane.b32.xlu0 %v344, 28
    %v788 = vpop.permute.xlu0 %787
    %789 = vrot.lane.b32.xlu0 %v345, 28
    %v790 = vpop.permute.xlu0 %789
    %791 = vrot.lane.b32.xlu0 %v346, 28
    %v792 = vpop.permute.xlu0 %791
    %793 = vrot.lane.b32.xlu0 %v347, 28
    %v794 = vpop.permute.xlu0 %793
    %795 = vrot.lane.b32.xlu0 %v348, 28
    %v796 = vpop.permute.xlu0 %795
    %829 = vrot.lane.b32.xlu0 %v349, 32
    %v830 = vpop.permute.xlu0 %829
    %831 = vrot.lane.b32.xlu0 %v350, 32
    %v832 = vpop.permute.xlu0 %831
    %833 = vrot.lane.b32.xlu0 %v351, 32
    %v834 = vpop.permute.xlu0 %833
    %835 = vrot.lane.b32.xlu0 %v352, 32
    %v836 = vpop.permute.xlu0 %835
    %837 = vrot.lane.b32.xlu0 %v353, 32
    %v838 = vpop.permute.xlu0 %837
    %839 = vrot.lane.b32.xlu0 %v354, 32
    %v840 = vpop.permute.xlu0 %839
    %841 = vrot.lane.b32.xlu0 %v355, 32
    %v842 = vpop.permute.xlu0 %841
    %843 = vrot.lane.b32.xlu0 %v356, 32
    %v844 = vpop.permute.xlu0 %843
    %845 = vrot.lane.b32.xlu0 %v357, 32
    %v846 = vpop.permute.xlu0 %845
    %847 = vrot.lane.b32.xlu0 %v358, 32
    %v848 = vpop.permute.xlu0 %847
    %849 = vrot.lane.b32.xlu0 %v359, 32
    %v850 = vpop.permute.xlu0 %849
    %851 = vrot.lane.b32.xlu0 %v360, 32
    %v852 = vpop.permute.xlu0 %851
    %853 = vrot.lane.b32.xlu0 %v361, 32
    %v854 = vpop.permute.xlu0 %853
    %855 = vrot.lane.b32.xlu0 %v362, 32
    %v856 = vpop.permute.xlu0 %855
    %857 = vrot.lane.b32.xlu0 %v363, 32
    %v858 = vpop.permute.xlu0 %857
    %859 = vrot.lane.b32.xlu0 %v364, 32
    %v860 = vpop.permute.xlu0 %859
    %v877 = vsel %vm161, %v220, %v382
    %v878 = vsel %vm161, %v221, %v384
    %v879 = vsel %vm161, %v222, %v386
    %v880 = vsel %vm161, %v223, %v388
    %v881 = vsel %vm161, %v224, %v390
    %v882 = vsel %vm161, %v225, %v392
    %v883 = vsel %vm161, %v226, %v394
    %v884 = vsel %vm161, %v227, %v396
    %v885 = vsel %vm161, %v228, %v398
    %v886 = vsel %vm161, %v229, %v400
    %v887 = vsel %vm161, %v230, %v402
    %v888 = vsel %vm161, %v231, %v404
    %v889 = vsel %vm161, %v232, %v406
    %v890 = vsel %vm161, %v233, %v408
    %v891 = vsel %vm161, %v234, %v410
    %v892 = vsel %vm161, %v235, %v412
    %vm893 = vcmask 64512
    %v894 = vsel %vm893, %v877, %v446
    %v895 = vsel %vm893, %v878, %v448
    %v896 = vsel %vm893, %v879, %v450
    %v897 = vsel %vm893, %v880, %v452
    %v898 = vsel %vm893, %v881, %v454
    %v899 = vsel %vm893, %v882, %v456
    %v900 = vsel %vm893, %v883, %v458
    %v901 = vsel %vm893, %v884, %v460
    %v902 = vsel %vm893, %v885, %v462
    %v903 = vsel %vm893, %v886, %v464
    %v904 = vsel %vm893, %v887, %v466
    %v905 = vsel %vm893, %v888, %v468
    %v906 = vsel %vm893, %v889, %v470
    %v907 = vsel %vm893, %v890, %v472
    %v908 = vsel %vm893, %v891, %v474
    %v909 = vsel %vm893, %v892, %v476
    %vm910 = vcmask 97280
    %v911 = vsel %vm910, %v894, %v510
    %v912 = vsel %vm910, %v895, %v512
    %v913 = vsel %vm910, %v896, %v514
    %v914 = vsel %vm910, %v897, %v516
    %v915 = vsel %vm910, %v898, %v518
    %v916 = vsel %vm910, %v899, %v520
    %v917 = vsel %vm910, %v900, %v522
    %v918 = vsel %vm910, %v901, %v524
    %v919 = vsel %vm910, %v902, %v526
    %v920 = vsel %vm910, %v903, %v528
    %v921 = vsel %vm910, %v904, %v530
    %v922 = vsel %vm910, %v905, %v532
    %v923 = vsel %vm910, %v906, %v534
    %v924 = vsel %vm910, %v907, %v536
    %v925 = vsel %vm910, %v908, %v538
    %v926 = vsel %vm910, %v909, %v540
    %vm927 = vcmask 130048
    %v928 = vsel %vm927, %v911, %v574
    %v929 = vsel %vm927, %v912, %v576
    %v930 = vsel %vm927, %v913, %v578
    %v931 = vsel %vm927, %v914, %v580
    %v932 = vsel %vm927, %v915, %v582
    %v933 = vsel %vm927, %v916, %v584
    %v934 = vsel %vm927, %v917, %v586
    %v935 = vsel %vm927, %v918, %v588
    %v936 = vsel %vm927, %v919, %v590
    %v937 = vsel %vm927, %v920, %v592
    %v938 = vsel %vm927, %v921, %v594
    %v939 = vsel %vm927, %v922, %v596
    %v940 = vsel %vm927, %v923, %v598
    %v941 = vsel %vm927, %v924, %v600
    %v942 = vsel %vm927, %v925, %v602
    %v943 = vsel %vm927, %v926, %v604
    %vm944 = vcmask 162816
    %v945 = vsel %vm944, %v928, %v638
    %v946 = vsel %vm944, %v929, %v640
    %v947 = vsel %vm944, %v930, %v642
    %v948 = vsel %vm944, %v931, %v644
    %v949 = vsel %vm944, %v932, %v646
    %v950 = vsel %vm944, %v933, %v648
    %v951 = vsel %vm944, %v934, %v650
    %v952 = vsel %vm944, %v935, %v652
    %v953 = vsel %vm944, %v936, %v654
    %v954 = vsel %vm944, %v937, %v656
    %v955 = vsel %vm944, %v938, %v658
    %v956 = vsel %vm944, %v939, %v660
    %v957 = vsel %vm944, %v940, %v662
    %v958 = vsel %vm944, %v941, %v664
    %v959 = vsel %vm944, %v942, %v666
    %v960 = vsel %vm944, %v943, %v668
    %vm961 = vcmask 195584
    %v962 = vsel %vm961, %v945, %v702
    %v963 = vsel %vm961, %v946, %v704
    %v964 = vsel %vm961, %v947, %v706
    %v965 = vsel %vm961, %v948, %v708
    %v966 = vsel %vm961, %v949, %v710
    %v967 = vsel %vm961, %v950, %v712
    %v968 = vsel %vm961, %v951, %v714
    %v969 = vsel %vm961, %v952, %v716
    %v970 = vsel %vm961, %v953, %v718
    %v971 = vsel %vm961, %v954, %v720
    %v972 = vsel %vm961, %v955, %v722
    %v973 = vsel %vm961, %v956, %v724
    %v974 = vsel %vm961, %v957, %v726
    %v975 = vsel %vm961, %v958, %v728
    %v976 = vsel %vm961, %v959, %v730
    %v977 = vsel %vm961, %v960, %v732
    %vm978 = vcmask 228352
    %v979 = vsel %vm978, %v962, %v766
    %v980 = vsel %vm978, %v963, %v768
    %v981 = vsel %vm978, %v964, %v770
    %v982 = vsel %vm978, %v965, %v772
    %v983 = vsel %vm978, %v966, %v774
    %v984 = vsel %vm978, %v967, %v776
    %v985 = vsel %vm978, %v968, %v778
    %v986 = vsel %vm978, %v969, %v780
    %v987 = vsel %vm978, %v970, %v782
    %v988 = vsel %vm978, %v971, %v784
    %v989 = vsel %vm978, %v972, %v786
    %v990 = vsel %vm978, %v973, %v788
    %v991 = vsel %vm978, %v974, %v790
    %v992 = vsel %vm978, %v975, %v792
    %v993 = vsel %vm978, %v976, %v794
    %v994 = vsel %vm978, %v977, %v796
    %vm995 = vcmask 261120
    %v996 = vsel %vm995, %v979, %v830
    %v997 = vsel %vm995, %v980, %v832
    %v998 = vsel %vm995, %v981, %v834
    %v999 = vsel %vm995, %v982, %v836
    %v1000 = vsel %vm995, %v983, %v838
    %v1001 = vsel %vm995, %v984, %v840
    %v1002 = vsel %vm995, %v985, %v842
    %v1003 = vsel %vm995, %v986, %v844
    %v1004 = vsel %vm995, %v987, %v846
    %v1005 = vsel %vm995, %v988, %v848
    %v1006 = vsel %vm995, %v989, %v850
    %v1007 = vsel %vm995, %v990, %v852
    %v1008 = vsel %vm995, %v991, %v854
    %v1009 = vsel %vm995, %v992, %v856
    %v1010 = vsel %vm995, %v993, %v858
    %v1011 = vsel %vm995, %v994, %v860
    %v1012 = vld [vmem:[%s1] sm:$0xff]
    %v1013 = vld [vmem:[%s1 + $0x8] sm:$0xff]
    %v1014 = vld [vmem:[%s1 + $0x10] sm:$0xff]
    %v1015 = vld [vmem:[%s1 + $0x18] sm:$0xff]
    %v1016 = vld [vmem:[%s1 + $0x20] sm:$0xf]
    %v1017 = vld [vmem:[%s2] sm:$0x1]
    %v1019 = vlaneseq
    %v1020 = vshrl.u32 %v1019, 7
    %v1021 = vsub.s32 0, %v1020
    %v1022 = vrot.slane %v1017, %v1021
    %vm1024 = vcmask 293888
    %v1026 = vsel %vm1024, %v996, 0
    %v1029 = vsel %vm1024, %v997, 0
    %v1032 = vsel %vm1024, %v998, 0
    %v1035 = vsel %vm1024, %v999, 0
    %v1038 = vsel %vm1024, %v1000, 0
    %v1041 = vsel %vm1024, %v1001, 0
    %v1044 = vsel %vm1024, %v1002, 0
    %v1047 = vsel %vm1024, %v1003, 0
    %v1050 = vsel %vm1024, %v1004, 0
    %v1053 = vsel %vm1024, %v1005, 0
    %v1056 = vsel %vm1024, %v1006, 0
    %v1059 = vsel %vm1024, %v1007, 0
    %v1062 = vsel %vm1024, %v1008, 0
    %v1065 = vsel %vm1024, %v1009, 0
    %v1068 = vsel %vm1024, %v1010, 0
    %v1071 = vsel %vm1024, %v1011, 0
    %vm1073 = vcmask 1043456
    %v1075 = vsel %vm1073, %v1016, 0
    %1077 = vmatprep.subr.mxu0 0.0
    %1078 = vmatpush1.msra.mxu0 %v1012
    %1079 = vmatprep.subr.mxu0 0.0
    %1080 = vmatpush1.msra.mxu0 %v1013
    %1081 = vmatprep.subr.mxu0 0.0
    %1082 = vmatpush1.msra.mxu0 %v1014
    %1083 = vmatprep.subr.mxu0 0.0
    %1084 = vmatpush1.msra.mxu0 %v1015
    %1085 = vmatprep.subr.mxu0 0.0
    %1086 = vmatpush1.msra.mxu0 %v1075
    %1087 = vmatprep.subr.mxu0 0.0
    %1088 = vmatpush1.msra.mxu0 0.0
    %1089 = vmatprep.subr.mxu0 0.0
    %1090 = vmatpush1.msra.mxu0 0.0
    %1091 = vmatprep.subr.mxu0 0.0
    %1092 = vmatpush1.msra.mxu0 0.0
    %1093 = vmatprep.subr.mxu0 0.0
    %1094 = vmatpush1.msra.mxu0 0.0
    %1095 = vmatprep.subr.mxu0 0.0
    %1096 = vmatpush1.msra.mxu0 0.0
    %1097 = vmatprep.subr.mxu0 0.0
    %1098 = vmatpush1.msra.mxu0 0.0
    %1099 = vmatprep.subr.mxu0 0.0
    %1100 = vmatpush1.msra.mxu0 0.0
    %1101 = vmatprep.subr.mxu0 0.0
    %1102 = vmatpush1.msra.mxu0 0.0
    %1103 = vmatprep.subr.mxu0 0.0
    %1104 = vmatpush1.msra.mxu0 0.0
    %1105 = vmatprep.subr.mxu0 0.0
    %1106 = vmatpush1.msra.mxu0 0.0
    %1107 = vmatprep.subr.mxu0 0.0
    %1108 = vmatpush1.msra.mxu0 0.0
    %1109 = vmatprep.subr.mxu0 0.0
    %1110 = vmatpush1.msra.mxu0 0.0
    %1111 = vmatprep.subr.mxu0 0.0
    %1112 = vmatpush1.msra.mxu0 0.0
    %1113 = vmatprep.subr.mxu0 0.0
    %1114 = vmatpush1.msra.mxu0 0.0
    %1115 = vmatprep.subr.mxu0 0.0
    %1116 = vmatpush1.msra.mxu0 0.0
    %1117 = vmatprep.subr.mxu0 0.0
    %1118 = vmatpush1.msra.mxu0 0.0
    %1119 = vmatprep.subr.mxu0 0.0
    %1120 = vmatpush1.msra.mxu0 0.0
    %1121 = vmatprep.subr.mxu0 0.0
    %1122 = vmatpush1.msra.mxu0 0.0
    %1123 = vmatprep.subr.mxu0 0.0
    %1124 = vmatpush1.msra.mxu0 0.0
    %1125 = vmatprep.subr.mxu0 0.0
    %1126 = vmatpush1.msra.mxu0 0.0
    %1127 = vmatprep.subr.mxu0 0.0
    %1128 = vmatpush1.msra.mxu0 0.0
    %1129 = vmatprep.subr.mxu0 0.0
    %1130 = vmatpush1.msra.mxu0 0.0
    %1131 = vmatprep.subr.mxu0 0.0
    %1132 = vmatpush1.msra.mxu0 0.0
    %1133 = vmatprep.subr.mxu0 0.0
    %1134 = vmatpush1.msra.mxu0 0.0
    %1135 = vmatprep.subr.mxu0 0.0
    %1136 = vmatpush1.msra.mxu0 0.0
    %1137 = vmatprep.subr.mxu0 0.0
    %1138 = vmatpush1.msra.mxu0 0.0
    %1139 = vmatprep.subr.mxu0 0.0
    %1140 = vmatpush1.msra.mxu0 0.0
    %1141 = vmatprep.mubr.f32.mxu0 0.0
    %1142 = vmatmul.mubr.f32.gmra.mrb[0].mxu0 %v1026
    %v1143 = vpop.f32.mrb[0].mxu0
    %v1144 = vadd.f32 %v1022, %v1143
    %v1145 = vpop.f32.mrb[0].mxu0
    %1146 = vmatprep.mubr.f32.mxu0 0.0
    %1147 = vmatmul.mubr.f32.gmra.mrb[0].mxu0 %v1029
    %v1148 = vpop.f32.mrb[0].mxu0
    %v1149 = vadd.f32 %v1022, %v1148
    %v1150 = vpop.f32.mrb[0].mxu0
    %1151 = vmatprep.mubr.f32.mxu0 0.0
    %1152 = vmatmul.mubr.f32.gmra.mrb[0].mxu0 %v1032
    %v1153 = vpop.f32.mrb[0].mxu0
    %v1154 = vadd.f32 %v1022, %v1153
    %v1155 = vpop.f32.mrb[0].mxu0
    %1156 = vmatprep.mubr.f32.mxu0 0.0
    %1157 = vmatmul.mubr.f32.gmra.mrb[0].mxu0 %v1035
    %v1158 = vpop.f32.mrb[0].mxu0
    %v1159 = vadd.f32 %v1022, %v1158
    %v1160 = vpop.f32.mrb[0].mxu0
    %1161 = vmatprep.mubr.f32.mxu0 0.0
    %1162 = vmatmul.mubr.f32.gmra.mrb[0].mxu0 %v1038
    %v1163 = vpop.f32.mrb[0].mxu0
    %v1164 = vadd.f32 %v1022, %v1163
    %v1165 = vpop.f32.mrb[0].mxu0
    %1166 = vmatprep.mubr.f32.mxu0 0.0
    %1167 = vmatmul.mubr.f32.gmra.mrb[0].mxu0 %v1041
    %v1168 = vpop.f32.mrb[0].mxu0
    %v1169 = vadd.f32 %v1022, %v1168
    %v1170 = vpop.f32.mrb[0].mxu0
    %1171 = vmatprep.mubr.f32.mxu0 0.0
    %1172 = vmatmul.mubr.f32.gmra.mrb[0].mxu0 %v1044
    %v1173 = vpop.f32.mrb[0].mxu0
    %v1174 = vadd.f32 %v1022, %v1173
    %v1175 = vpop.f32.mrb[0].mxu0
    %1176 = vmatprep.mubr.f32.mxu0 0.0
    %1177 = vmatmul.mubr.f32.gmra.mrb[0].mxu0 %v1047
    %v1178 = vpop.f32.mrb[0].mxu0
    %v1179 = vadd.f32 %v1022, %v1178
    %v1180 = vpop.f32.mrb[0].mxu0
    %1181 = vmatprep.mubr.f32.mxu0 0.0
    %1182 = vmatmul.mubr.f32.gmra.mrb[0].mxu0 %v1050
    %v1183 = vpop.f32.mrb[0].mxu0
    %v1184 = vadd.f32 %v1022, %v1183
    %v1185 = vpop.f32.mrb[0].mxu0
    %1186 = vmatprep.mubr.f32.mxu0 0.0
    %1187 = vmatmul.mubr.f32.gmra.mrb[0].mxu0 %v1053
    %v1188 = vpop.f32.mrb[0].mxu0
    %v1189 = vadd.f32 %v1022, %v1188
    %v1190 = vpop.f32.mrb[0].mxu0
    %1191 = vmatprep.mubr.f32.mxu0 0.0
    %1192 = vmatmul.mubr.f32.gmra.mrb[0].mxu0 %v1056
    %v1193 = vpop.f32.mrb[0].mxu0
    %v1194 = vadd.f32 %v1022, %v1193
    %v1195 = vpop.f32.mrb[0].mxu0
    %1196 = vmatprep.mubr.f32.mxu0 0.0
    %1197 = vmatmul.mubr.f32.gmra.mrb[0].mxu0 %v1059
    %v1198 = vpop.f32.mrb[0].mxu0
    %v1199 = vadd.f32 %v1022, %v1198
    %v1200 = vpop.f32.mrb[0].mxu0
    %1201 = vmatprep.mubr.f32.mxu0 0.0
    %1202 = vmatmul.mubr.f32.gmra.mrb[0].mxu0 %v1062
    %v1203 = vpop.f32.mrb[0].mxu0
    %v1204 = vadd.f32 %v1022, %v1203
    %v1205 = vpop.f32.mrb[0].mxu0
    %1206 = vmatprep.mubr.f32.mxu0 0.0
    %1207 = vmatmul.mubr.f32.gmra.mrb[0].mxu0 %v1065
    %v1208 = vpop.f32.mrb[0].mxu0
    %v1209 = vadd.f32 %v1022, %v1208
    %v1210 = vpop.f32.mrb[0].mxu0
    %1211 = vmatprep.mubr.f32.mxu0 0.0
    %1212 = vmatmul.mubr.f32.gmra.mrb[0].mxu0 %v1068
    %v1213 = vpop.f32.mrb[0].mxu0
    %v1214 = vadd.f32 %v1022, %v1213
    %v1215 = vpop.f32.mrb[0].mxu0
    %1216 = vmatprep.mubr.f32.mxu0 0.0
    %1217 = vmatmul.mubr.f32.gmra.mrb[0].mxu0 %v1071
    %v1218 = vpop.f32.mrb[0].mxu0
    %v1219 = vadd.f32 %v1022, %v1218
    %v1220 = vpop.f32.mrb[0].mxu0
    %1221 = vdwg.mxu0
    %v1222 = vld [vmem:[%s3] sm:$0x1]
    %v1223 = vld [vmem:[%s4] sm:$0x1]
    %v1224 = vsel %vm893, %v1144, 0.0
    %v1225 = vsel %vm893, %v1149, 0.0
    %v1226 = vadd.f32 %v1224, %v1225
    %v1227 = vsel %vm893, %v1154, 0.0
    %v1228 = vadd.f32 %v1226, %v1227
    %v1229 = vsel %vm893, %v1159, 0.0
    %v1230 = vadd.f32 %v1228, %v1229
    %v1231 = vsel %vm893, %v1164, 0.0
    %v1232 = vadd.f32 %v1230, %v1231
    %v1233 = vsel %vm893, %v1169, 0.0
    %v1234 = vadd.f32 %v1232, %v1233
    %v1235 = vsel %vm893, %v1174, 0.0
    %v1236 = vadd.f32 %v1234, %v1235
    %v1237 = vsel %vm893, %v1179, 0.0
    %v1238 = vadd.f32 %v1236, %v1237
    %v1239 = vsel %vm893, %v1184, 0.0
    %v1240 = vadd.f32 %v1238, %v1239
    %v1241 = vsel %vm893, %v1189, 0.0
    %v1242 = vadd.f32 %v1240, %v1241
    %v1243 = vsel %vm893, %v1194, 0.0
    %v1244 = vadd.f32 %v1242, %v1243
    %v1245 = vsel %vm893, %v1199, 0.0
    %v1246 = vadd.f32 %v1244, %v1245
    %v1247 = vsel %vm893, %v1204, 0.0
    %v1248 = vadd.f32 %v1246, %v1247
    %v1249 = vsel %vm893, %v1209, 0.0
    %v1250 = vadd.f32 %v1248, %v1249
    %v1251 = vsel %vm893, %v1214, 0.0
    %v1252 = vadd.f32 %v1250, %v1251
    %v1253 = vsel %vm893, %v1219, 0.0
    %v1254 = vadd.f32 %v1252, %v1253
    %v1255 = vrot.slane %v1254, 4
    %v1256 = vadd.f32 %v1254, %v1255
    %v1257 = vrot.slane %v1256, 2
    %v1258 = vadd.f32 %v1256, %v1257
    %v1259 = vrot.slane %v1258, 1
    %v1260 = vadd.f32 %v1258, %v1259
    %v1261 = vrcp.pop 128.0
    %v1262 = vmul.f32 %v1260, %v1261
    %v1263 = vmul.f32 %v1144, %v1144
    %v1264 = vmul.f32 %v1149, %v1149
    %v1265 = vmul.f32 %v1154, %v1154
    %v1266 = vmul.f32 %v1159, %v1159
    %v1267 = vmul.f32 %v1164, %v1164
    %v1268 = vmul.f32 %v1169, %v1169
    %v1269 = vmul.f32 %v1174, %v1174
    %v1270 = vmul.f32 %v1179, %v1179
    %v1271 = vmul.f32 %v1184, %v1184
    %v1272 = vmul.f32 %v1189, %v1189
    %v1273 = vmul.f32 %v1194, %v1194
    %v1274 = vmul.f32 %v1199, %v1199
    %v1275 = vmul.f32 %v1204, %v1204
    %v1276 = vmul.f32 %v1209, %v1209
    %v1277 = vmul.f32 %v1214, %v1214
    %v1278 = vmul.f32 %v1219, %v1219
    %v1279 = vsel %vm893, %v1263, 0.0
    %v1280 = vsel %vm893, %v1264, 0.0
    %v1281 = vadd.f32 %v1279, %v1280
    %v1282 = vsel %vm893, %v1265, 0.0
    %v1283 = vadd.f32 %v1281, %v1282
    %v1284 = vsel %vm893, %v1266, 0.0
    %v1285 = vadd.f32 %v1283, %v1284
    %v1286 = vsel %vm893, %v1267, 0.0
    %v1287 = vadd.f32 %v1285, %v1286
    %v1288 = vsel %vm893, %v1268, 0.0
    %v1289 = vadd.f32 %v1287, %v1288
    %v1290 = vsel %vm893, %v1269, 0.0
    %v1291 = vadd.f32 %v1289, %v1290
    %v1292 = vsel %vm893, %v1270, 0.0
    %v1293 = vadd.f32 %v1291, %v1292
    %v1294 = vsel %vm893, %v1271, 0.0
    %v1295 = vadd.f32 %v1293, %v1294
    %v1296 = vsel %vm893, %v1272, 0.0
    %v1297 = vadd.f32 %v1295, %v1296
    %v1298 = vsel %vm893, %v1273, 0.0
    %v1299 = vadd.f32 %v1297, %v1298
    %v1300 = vsel %vm893, %v1274, 0.0
    %v1301 = vadd.f32 %v1299, %v1300
    %v1302 = vsel %vm893, %v1275, 0.0
    %v1303 = vadd.f32 %v1301, %v1302
    %v1304 = vsel %vm893, %v1276, 0.0
    %v1305 = vadd.f32 %v1303, %v1304
    %v1306 = vsel %vm893, %v1277, 0.0
    %v1307 = vadd.f32 %v1305, %v1306
    %v1308 = vsel %vm893, %v1278, 0.0
    %v1309 = vadd.f32 %v1307, %v1308
    %v1310 = vrot.slane %v1309, 4
    %v1311 = vadd.f32 %v1309, %v1310
    %v1312 = vrot.slane %v1311, 2
    %v1313 = vadd.f32 %v1311, %v1312
    %v1314 = vrot.slane %v1313, 1
    %v1315 = vadd.f32 %v1313, %v1314
    %v1316 = vmul.f32 %v1315, %v1261
    %v1317 = vmul.f32 %v1262, %v1262
    %v1318 = vsub.f32 %v1316, %v1317
    %v1319 = vadd.f32 %v1318, 1e-05
    %v1320 = vrsqrt.pop %v1319
    %v1321 = vsub.f32 %v1144, %v1262
    %v1322 = vsub.f32 %v1149, %v1262
    %v1323 = vsub.f32 %v1154, %v1262
    %v1324 = vsub.f32 %v1159, %v1262
    %v1325 = vsub.f32 %v1164, %v1262
    %v1326 = vsub.f32 %v1169, %v1262
    %v1327 = vsub.f32 %v1174, %v1262
    %v1328 = vsub.f32 %v1179, %v1262
    %v1329 = vsub.f32 %v1184, %v1262
    %v1330 = vsub.f32 %v1189, %v1262
    %v1331 = vsub.f32 %v1194, %v1262
    %v1332 = vsub.f32 %v1199, %v1262
    %v1333 = vsub.f32 %v1204, %v1262
    %v1334 = vsub.f32 %v1209, %v1262
    %v1335 = vsub.f32 %v1214, %v1262
    %v1336 = vsub.f32 %v1219, %v1262
    %v1337 = vmul.f32 %v1321, %v1320
    %v1338 = vmul.f32 %v1322, %v1320
    %v1339 = vmul.f32 %v1323, %v1320
    %v1340 = vmul.f32 %v1324, %v1320
    %v1341 = vmul.f32 %v1325, %v1320
    %v1342 = vmul.f32 %v1326, %v1320
    %v1343 = vmul.f32 %v1327, %v1320
    %v1344 = vmul.f32 %v1328, %v1320
    %v1345 = vmul.f32 %v1329, %v1320
    %v1346 = vmul.f32 %v1330, %v1320
    %v1347 = vmul.f32 %v1331, %v1320
    %v1348 = vmul.f32 %v1332, %v1320
    %v1349 = vmul.f32 %v1333, %v1320
    %v1350 = vmul.f32 %v1334, %v1320
    %v1351 = vmul.f32 %v1335, %v1320
    %v1352 = vmul.f32 %v1336, %v1320
    %v1354 = vlaneseq
    %v1355 = vshrl.u32 %v1354, 7
    %v1356 = vsub.s32 0, %v1355
    %v1357 = vrot.slane %v1222, %v1356
    %v1359 = vmul.f32 %v1337, %v1357
    %v1360 = vmul.f32 %v1338, %v1357
    %v1361 = vmul.f32 %v1339, %v1357
    %v1362 = vmul.f32 %v1340, %v1357
    %v1363 = vmul.f32 %v1341, %v1357
    %v1364 = vmul.f32 %v1342, %v1357
    %v1365 = vmul.f32 %v1343, %v1357
    %v1366 = vmul.f32 %v1344, %v1357
    %v1367 = vmul.f32 %v1345, %v1357
    %v1368 = vmul.f32 %v1346, %v1357
    %v1369 = vmul.f32 %v1347, %v1357
    %v1370 = vmul.f32 %v1348, %v1357
    %v1371 = vmul.f32 %v1349, %v1357
    %v1372 = vmul.f32 %v1350, %v1357
    %v1373 = vmul.f32 %v1351, %v1357
    %v1374 = vmul.f32 %v1352, %v1357
    %v1376 = vlaneseq
    %v1377 = vshrl.u32 %v1376, 7
    %v1378 = vsub.s32 0, %v1377
    %v1379 = vrot.slane %v1223, %v1378
    %v1381 = vadd.f32 %v1359, %v1379
    %v1382 = vadd.f32 %v1360, %v1379
    %v1383 = vadd.f32 %v1361, %v1379
    %v1384 = vadd.f32 %v1362, %v1379
    %v1385 = vadd.f32 %v1363, %v1379
    %v1386 = vadd.f32 %v1364, %v1379
    %v1387 = vadd.f32 %v1365, %v1379
    %v1388 = vadd.f32 %v1366, %v1379
    %v1389 = vadd.f32 %v1367, %v1379
    %v1390 = vadd.f32 %v1368, %v1379
    %v1391 = vadd.f32 %v1369, %v1379
    %v1392 = vadd.f32 %v1370, %v1379
    %v1393 = vadd.f32 %v1371, %v1379
    %v1394 = vadd.f32 %v1372, %v1379
    %v1395 = vadd.f32 %v1373, %v1379
    %v1396 = vadd.f32 %v1374, %v1379
    %v1397 = vmax.f32 %v1381, 0.0
    %v1398 = vmax.f32 %v1382, 0.0
    %v1399 = vmax.f32 %v1383, 0.0
    %v1400 = vmax.f32 %v1384, 0.0
    %v1401 = vmax.f32 %v1385, 0.0
    %v1402 = vmax.f32 %v1386, 0.0
    %v1403 = vmax.f32 %v1387, 0.0
    %v1404 = vmax.f32 %v1388, 0.0
    %v1405 = vmax.f32 %v1389, 0.0
    %v1406 = vmax.f32 %v1390, 0.0
    %v1407 = vmax.f32 %v1391, 0.0
    %v1408 = vmax.f32 %v1392, 0.0
    %v1409 = vmax.f32 %v1393, 0.0
    %v1410 = vmax.f32 %v1394, 0.0
    %v1411 = vmax.f32 %v1395, 0.0
    %v1412 = vmax.f32 %v1396, 0.0
    %1413 = vst.msk [vmem:[#allocation3] sm:$0xff] %vm893, 0.0
    %vm1414 = vcmask 58368
    %1415 = vst.msk [vmem:[#allocation3 + $0x8] sm:$0x3] %vm1414, 0.0
    %1416 = vst.msk [vmem:[#allocation3 + $0x10] sm:$0xff] %vm893, 0.0
    %1417 = vst.msk [vmem:[#allocation3 + $0x18] sm:$0x3] %vm1414, 0.0
    %1418 = vst.msk [vmem:[#allocation3 + $0x20] sm:$0xff] %vm893, 0.0
    %1419 = vst.msk [vmem:[#allocation3 + $0x28] sm:$0x3] %vm1414, 0.0
    %1420 = vst.msk [vmem:[#allocation3 + $0x30] sm:$0xff] %vm893, 0.0
    %1421 = vst.msk [vmem:[#allocation3 + $0x38] sm:$0x3] %vm1414, 0.0
    %1422 = vst.msk [vmem:[#allocation3 + $0x40] sm:$0xff] %vm893, 0.0
    %1423 = vst.msk [vmem:[#allocation3 + $0x48] sm:$0x3] %vm1414, 0.0
    %1424 = vst.msk [vmem:[#allocation3 + $0x50] sm:$0xff] %vm893, 0.0
    %1425 = vst.msk [vmem:[#allocation3 + $0x58] sm:$0x3] %vm1414, 0.0
    %1426 = vst.msk [vmem:[#allocation3 + $0x60] sm:$0xff] %vm893, 0.0
    %1427 = vst.msk [vmem:[#allocation3 + $0x68] sm:$0x3] %vm1414, 0.0
    %1428 = vst.msk [vmem:[#allocation3 + $0x70] sm:$0xff] %vm893, 0.0
    %1429 = vst.msk [vmem:[#allocation3 + $0x78] sm:$0x3] %vm1414, 0.0
    %1430 = vst.msk [vmem:[#allocation3 + $0x80] sm:$0xff] %vm893, 0.0
    %1431 = vst.msk [vmem:[#allocation3 + $0x88] sm:$0x3] %vm1414, 0.0
    %1432 = vst.msk [vmem:[#allocation3 + $0x90] sm:$0xff] %vm893, 0.0
    %1433 = vst.msk [vmem:[#allocation3 + $0x98] sm:$0x3] %vm1414, 0.0
    %1434 = vst.msk [vmem:[#allocation3 + $0xa0] sm:$0xff] %vm893, 0.0
    %1435 = vst.msk [vmem:[#allocation3 + $0xa8] sm:$0x3] %vm1414, 0.0
    %1436 = vst.msk [vmem:[#allocation3 + $0xb0] sm:$0xff] %vm893, 0.0
    %1437 = vst.msk [vmem:[#allocation3 + $0xb8] sm:$0x3] %vm1414, 0.0
    %1438 = vst.msk [vmem:[#allocation3 + $0xc0] sm:$0xff] %vm893, 0.0
    %1439 = vst.msk [vmem:[#allocation3 + $0xc8] sm:$0x3] %vm1414, 0.0
    %1440 = vst.msk [vmem:[#allocation3 + $0xd0] sm:$0xff] %vm893, 0.0
    %1441 = vst.msk [vmem:[#allocation3 + $0xd8] sm:$0x3] %vm1414, 0.0
    %1442 = vst.msk [vmem:[#allocation3 + $0xe0] sm:$0xff] %vm893, 0.0
    %1443 = vst.msk [vmem:[#allocation3 + $0xe8] sm:$0x3] %vm1414, 0.0
    %1444 = vst.msk [vmem:[#allocation3 + $0xf0] sm:$0xff] %vm893, 0.0
    %1445 = vst.msk [vmem:[#allocation3 + $0xf8] sm:$0x3] %vm1414, 0.0
    %1446 = vst.msk [vmem:[#allocation3 + $0x100] sm:$0xff] %vm893, 0.0
    %1447 = vst.msk [vmem:[#allocation3 + $0x108] sm:$0x3] %vm1414, 0.0
    %1448 = vst.msk [vmem:[#allocation3 + $0x110] sm:$0xff] %vm893, 0.0
    %1449 = vst.msk [vmem:[#allocation3 + $0x118] sm:$0x3] %vm1414, 0.0
    %1450 = vst.msk [vmem:[#allocation3 + $0x120] sm:$0xff] %vm893, 0.0
    %1451 = vst.msk [vmem:[#allocation3 + $0x128] sm:$0x3] %vm1414, 0.0
    %1452 = vst.msk [vmem:[#allocation3 + $0x130] sm:$0xff] %vm893, 0.0
    %1453 = vst.msk [vmem:[#allocation3 + $0x138] sm:$0x3] %vm1414, 0.0
    %s1454 = scalar_lea.vmem [#allocation3], 16
    %1455 = vst.msk [vmem:[%s1454 + $0x1] sm:$0xff] %vm893, %v1397
    %1456 = vst.msk [vmem:[%s1454 + $0x11] sm:$0xff] %vm893, %v1398
    %1457 = vst.msk [vmem:[%s1454 + $0x21] sm:$0xff] %vm893, %v1399
    %1458 = vst.msk [vmem:[%s1454 + $0x31] sm:$0xff] %vm893, %v1400
    %1459 = vst.msk [vmem:[%s1454 + $0x41] sm:$0xff] %vm893, %v1401
    %1460 = vst.msk [vmem:[%s1454 + $0x51] sm:$0xff] %vm893, %v1402
    %1461 = vst.msk [vmem:[%s1454 + $0x61] sm:$0xff] %vm893, %v1403
    %1462 = vst.msk [vmem:[%s1454 + $0x71] sm:$0xff] %vm893, %v1404
    %1463 = vst.msk [vmem:[%s1454 + $0xa1] sm:$0xff] %vm893, %v1405
    %1464 = vst.msk [vmem:[%s1454 + $0xb1] sm:$0xff] %vm893, %v1406
    %1465 = vst.msk [vmem:[%s1454 + $0xc1] sm:$0xff] %vm893, %v1407
    %1466 = vst.msk [vmem:[%s1454 + $0xd1] sm:$0xff] %vm893, %v1408
    %1467 = vst.msk [vmem:[%s1454 + $0xe1] sm:$0xff] %vm893, %v1409
    %1468 = vst.msk [vmem:[%s1454 + $0xf1] sm:$0xff] %vm893, %v1410
    %1469 = vst.msk [vmem:[%s1454 + $0x101] sm:$0xff] %vm893, %v1411
    %1470 = vst.msk [vmem:[%s1454 + $0x111] sm:$0xff] %vm893, %v1412
    %v1471 = vld [vmem:[#allocation3] sm:$0xff]
    %v1472 = vld [vmem:[#allocation3 + $0x10] sm:$0xff]
    %v1473 = vld [vmem:[#allocation3 + $0x20] sm:$0xff]
    %v1474 = vld [vmem:[#allocation3 + $0x30] sm:$0xff]
    %v1475 = vld [vmem:[#allocation3 + $0x40] sm:$0xff]
    %v1476 = vld [vmem:[#allocation3 + $0x50] sm:$0xff]
    %v1477 = vld [vmem:[#allocation3 + $0x60] sm:$0xff]
    %v1478 = vld [vmem:[#allocation3 + $0x70] sm:$0xff]
    %v1479 = vld [vmem:[#allocation3 + $0xa0] sm:$0xff]
    %v1480 = vld [vmem:[#allocation3 + $0xb0] sm:$0xff]
    %v1481 = vld [vmem:[#allocation3 + $0xc0] sm:$0xff]
    %v1482 = vld [vmem:[#allocation3 + $0xd0] sm:$0xff]
    %v1483 = vld [vmem:[#allocation3 + $0xe0] sm:$0xff]
    %v1484 = vld [vmem:[#allocation3 + $0xf0] sm:$0xff]
    %v1485 = vld [vmem:[#allocation3 + $0x100] sm:$0xff]
    %v1486 = vld [vmem:[#allocation3 + $0x110] sm:$0xff]
    %v1487 = vld [vmem:[#allocation3 + $0x1] sm:$0xff]
    %v1488 = vld [vmem:[#allocation3 + $0x11] sm:$0xff]
    %v1489 = vld [vmem:[#allocation3 + $0x21] sm:$0xff]
    %v1490 = vld [vmem:[#allocation3 + $0x31] sm:$0xff]
    %v1491 = vld [vmem:[#allocation3 + $0x41] sm:$0xff]
    %v1492 = vld [vmem:[#allocation3 + $0x51] sm:$0xff]
    %v1493 = vld [vmem:[#allocation3 + $0x61] sm:$0xff]
    %v1494 = vld [vmem:[#allocation3 + $0x71] sm:$0xff]
    %v1495 = vld [vmem:[#allocation3 + $0xa1] sm:$0xff]
    %v1496 = vld [vmem:[#allocation3 + $0xb1] sm:$0xff]
    %v1497 = vld [vmem:[#allocation3 + $0xc1] sm:$0xff]
    %v1498 = vld [vmem:[#allocation3 + $0xd1] sm:$0xff]
    %v1499 = vld [vmem:[#allocation3 + $0xe1] sm:$0xff]
    %v1500 = vld [vmem:[#allocation3 + $0xf1] sm:$0xff]
    %v1501 = vld [vmem:[#allocation3 + $0x101] sm:$0xff]
    %v1502 = vld [vmem:[#allocation3 + $0x111] sm:$0xff]
    %v1503 = vld [vmem:[#allocation3 + $0x2] sm:$0xff]
    %v1504 = vld [vmem:[#allocation3 + $0x12] sm:$0xff]
    %v1505 = vld [vmem:[#allocation3 + $0x22] sm:$0xff]
    %v1506 = vld [vmem:[#allocation3 + $0x32] sm:$0xff]
    %v1507 = vld [vmem:[#allocation3 + $0x42] sm:$0xff]
    %v1508 = vld [vmem:[#allocation3 + $0x52] sm:$0xff]
    %v1509 = vld [vmem:[#allocation3 + $0x62] sm:$0xff]
    %v1510 = vld [vmem:[#allocation3 + $0x72] sm:$0xff]
    %v1511 = vld [vmem:[#allocation3 + $0xa2] sm:$0xff]
    %v1512 = vld [vmem:[#allocation3 + $0xb2] sm:$0xff]
    %v1513 = vld [vmem:[#allocation3 + $0xc2] sm:$0xff]
    %v1514 = vld [vmem:[#allocation3 + $0xd2] sm:$0xff]
    %v1515 = vld [vmem:[#allocation3 + $0xe2] sm:$0xff]
    %v1516 = vld [vmem:[#allocation3 + $0xf2] sm:$0xff]
    %v1517 = vld [vmem:[#allocation3 + $0x102] sm:$0xff]
    %v1518 = vld [vmem:[#allocation3 + $0x112] sm:$0xff]
    %v1519 = vld [vmem:[%s1454] sm:$0xff]
    %v1520 = vld [vmem:[%s1454 + $0x10] sm:$0xff]
    %v1521 = vld [vmem:[%s1454 + $0x20] sm:$0xff]
    %v1522 = vld [vmem:[%s1454 + $0x30] sm:$0xff]
    %v1523 = vld [vmem:[%s1454 + $0x40] sm:$0xff]
    %v1524 = vld [vmem:[%s1454 + $0x50] sm:$0xff]
    %v1525 = vld [vmem:[%s1454 + $0x60] sm:$0xff]
    %v1526 = vld [vmem:[%s1454 + $0x70] sm:$0xff]
    %v1527 = vld [vmem:[%s1454 + $0xa0] sm:$0xff]
    %v1528 = vld [vmem:[%s1454 + $0xb0] sm:$0xff]
    %v1529 = vld [vmem:[%s1454 + $0xc0] sm:$0xff]
    %v1530 = vld [vmem:[%s1454 + $0xd0] sm:$0xff]
    %v1531 = vld [vmem:[%s1454 + $0xe0] sm:$0xff]
    %v1532 = vld [vmem:[%s1454 + $0xf0] sm:$0xff]
    %v1533 = vld [vmem:[%s1454 + $0x100] sm:$0xff]
    %v1534 = vld [vmem:[%s1454 + $0x110] sm:$0xff]
    %v1535 = vld [vmem:[%s1454 + $0x1] sm:$0xff]
    %v1536 = vld [vmem:[%s1454 + $0x11] sm:$0xff]
    %v1537 = vld [vmem:[%s1454 + $0x21] sm:$0xff]
    %v1538 = vld [vmem:[%s1454 + $0x31] sm:$0xff]
    %v1539 = vld [vmem:[%s1454 + $0x41] sm:$0xff]
    %v1540 = vld [vmem:[%s1454 + $0x51] sm:$0xff]
    %v1541 = vld [vmem:[%s1454 + $0x61] sm:$0xff]
    %v1542 = vld [vmem:[%s1454 + $0x71] sm:$0xff]
    %v1543 = vld [vmem:[%s1454 + $0xa1] sm:$0xff]
    %v1544 = vld [vmem:[%s1454 + $0xb1] sm:$0xff]
    %v1545 = vld [vmem:[%s1454 + $0xc1] sm:$0xff]
    %v1546 = vld [vmem:[%s1454 + $0xd1] sm:$0xff]
    %v1547 = vld [vmem:[%s1454 + $0xe1] sm:$0xff]
    %v1548 = vld [vmem:[%s1454 + $0xf1] sm:$0xff]
    %v1549 = vld [vmem:[%s1454 + $0x101] sm:$0xff]
    %v1550 = vld [vmem:[%s1454 + $0x111] sm:$0xff]
    %v1551 = vld [vmem:[%s1454 + $0x2] sm:$0xff]
    %v1552 = vld [vmem:[%s1454 + $0x12] sm:$0xff]
    %v1553 = vld [vmem:[%s1454 + $0x22] sm:$0xff]
    %v1554 = vld [vmem:[%s1454 + $0x32] sm:$0xff]
    %v1555 = vld [vmem:[%s1454 + $0x42] sm:$0xff]
    %v1556 = vld [vmem:[%s1454 + $0x52] sm:$0xff]
    %v1557 = vld [vmem:[%s1454 + $0x62] sm:$0xff]
    %v1558 = vld [vmem:[%s1454 + $0x72] sm:$0xff]
    %v1559 = vld [vmem:[%s1454 + $0xa2] sm:$0xff]
    %v1560 = vld [vmem:[%s1454 + $0xb2] sm:$0xff]
    %v1561 = vld [vmem:[%s1454 + $0xc2] sm:$0xff]
    %v1562 = vld [vmem:[%s1454 + $0xd2] sm:$0xff]
    %v1563 = vld [vmem:[%s1454 + $0xe2] sm:$0xff]
    %v1564 = vld [vmem:[%s1454 + $0xf2] sm:$0xff]
    %v1565 = vld [vmem:[%s1454 + $0x102] sm:$0xff]
    %v1566 = vld [vmem:[%s1454 + $0x112] sm:$0xff]
    %s1567 = scalar_lea.vmem [#allocation3], 32
    %v1568 = vld [vmem:[%s1567] sm:$0xff]
    %v1569 = vld [vmem:[%s1567 + $0x10] sm:$0xff]
    %v1570 = vld [vmem:[%s1567 + $0x20] sm:$0xff]
    %v1571 = vld [vmem:[%s1567 + $0x30] sm:$0xff]
    %v1572 = vld [vmem:[%s1567 + $0x40] sm:$0xff]
    %v1573 = vld [vmem:[%s1567 + $0x50] sm:$0xff]
    %v1574 = vld [vmem:[%s1567 + $0x60] sm:$0xff]
    %v1575 = vld [vmem:[%s1567 + $0x70] sm:$0xff]
    %v1576 = vld [vmem:[%s1567 + $0xa0] sm:$0xff]
    %v1577 = vld [vmem:[%s1567 + $0xb0] sm:$0xff]
    %v1578 = vld [vmem:[%s1567 + $0xc0] sm:$0xff]
    %v1579 = vld [vmem:[%s1567 + $0xd0] sm:$0xff]
    %v1580 = vld [vmem:[%s1567 + $0xe0] sm:$0xff]
    %v1581 = vld [vmem:[%s1567 + $0xf0] sm:$0xff]
    %v1582 = vld [vmem:[%s1567 + $0x100] sm:$0xff]
    %v1583 = vld [vmem:[%s1567 + $0x110] sm:$0xff]
    %v1584 = vld [vmem:[%s1567 + $0x1] sm:$0xff]
    %v1585 = vld [vmem:[%s1567 + $0x11] sm:$0xff]
    %v1586 = vld [vmem:[%s1567 + $0x21] sm:$0xff]
    %v1587 = vld [vmem:[%s1567 + $0x31] sm:$0xff]
    %v1588 = vld [vmem:[%s1567 + $0x41] sm:$0xff]
    %v1589 = vld [vmem:[%s1567 + $0x51] sm:$0xff]
    %v1590 = vld [vmem:[%s1567 + $0x61] sm:$0xff]
    %v1591 = vld [vmem:[%s1567 + $0x71] sm:$0xff]
    %v1592 = vld [vmem:[%s1567 + $0xa1] sm:$0xff]
    %v1593 = vld [vmem:[%s1567 + $0xb1] sm:$0xff]
    %v1594 = vld [vmem:[%s1567 + $0xc1] sm:$0xff]
    %v1595 = vld [vmem:[%s1567 + $0xd1] sm:$0xff]
    %v1596 = vld [vmem:[%s1567 + $0xe1] sm:$0xff]
    %v1597 = vld [vmem:[%s1567 + $0xf1] sm:$0xff]
    %v1598 = vld [vmem:[%s1567 + $0x101] sm:$0xff]
    %v1599 = vld [vmem:[%s1567 + $0x111] sm:$0xff]
    %v1600 = vld [vmem:[%s1567 + $0x2] sm:$0xff]
    %v1601 = vld [vmem:[%s1567 + $0x12] sm:$0xff]
    %v1602 = vld [vmem:[%s1567 + $0x22] sm:$0xff]
    %v1603 = vld [vmem:[%s1567 + $0x32] sm:$0xff]
    %v1604 = vld [vmem:[%s1567 + $0x42] sm:$0xff]
    %v1605 = vld [vmem:[%s1567 + $0x52] sm:$0xff]
    %v1606 = vld [vmem:[%s1567 + $0x62] sm:$0xff]
    %v1607 = vld [vmem:[%s1567 + $0x72] sm:$0xff]
    %v1608 = vld [vmem:[%s1567 + $0xa2] sm:$0xff]
    %v1609 = vld [vmem:[%s1567 + $0xb2] sm:$0xff]
    %v1610 = vld [vmem:[%s1567 + $0xc2] sm:$0xff]
    %v1611 = vld [vmem:[%s1567 + $0xd2] sm:$0xff]
    %v1612 = vld [vmem:[%s1567 + $0xe2] sm:$0xff]
    %v1613 = vld [vmem:[%s1567 + $0xf2] sm:$0xff]
    %v1614 = vld [vmem:[%s1567 + $0x102] sm:$0xff]
    %v1615 = vld [vmem:[%s1567 + $0x112] sm:$0xff]
    %1632 = vrot.lane.b32.xlu0 %v1487, 8
    %v1633 = vpop.permute.xlu0 %1632
    %1634 = vrot.lane.b32.xlu0 %v1488, 8
    %v1635 = vpop.permute.xlu0 %1634
    %1636 = vrot.lane.b32.xlu0 %v1489, 8
    %v1637 = vpop.permute.xlu0 %1636
    %1638 = vrot.lane.b32.xlu0 %v1490, 8
    %v1639 = vpop.permute.xlu0 %1638
    %1640 = vrot.lane.b32.xlu0 %v1491, 8
    %v1641 = vpop.permute.xlu0 %1640
    %1642 = vrot.lane.b32.xlu0 %v1492, 8
    %v1643 = vpop.permute.xlu0 %1642
    %1644 = vrot.lane.b32.xlu0 %v1493, 8
    %v1645 = vpop.permute.xlu0 %1644
    %1646 = vrot.lane.b32.xlu0 %v1494, 8
    %v1647 = vpop.permute.xlu0 %1646
    %1648 = vrot.lane.b32.xlu0 %v1495, 8
    %v1649 = vpop.permute.xlu0 %1648
    %1650 = vrot.lane.b32.xlu0 %v1496, 8
    %v1651 = vpop.permute.xlu0 %1650
    %1652 = vrot.lane.b32.xlu0 %v1497, 8
    %v1653 = vpop.permute.xlu0 %1652
    %1654 = vrot.lane.b32.xlu0 %v1498, 8
    %v1655 = vpop.permute.xlu0 %1654
    %1656 = vrot.lane.b32.xlu0 %v1499, 8
    %v1657 = vpop.permute.xlu0 %1656
    %1658 = vrot.lane.b32.xlu0 %v1500, 8
    %v1659 = vpop.permute.xlu0 %1658
    %1660 = vrot.lane.b32.xlu0 %v1501, 8
    %v1661 = vpop.permute.xlu0 %1660
    %1662 = vrot.lane.b32.xlu0 %v1502, 8
    %v1663 = vpop.permute.xlu0 %1662
    %1696 = vrot.lane.b32.xlu0 %v1503, 16
    %v1697 = vpop.permute.xlu0 %1696
    %1698 = vrot.lane.b32.xlu0 %v1504, 16
    %v1699 = vpop.permute.xlu0 %1698
    %1700 = vrot.lane.b32.xlu0 %v1505, 16
    %v1701 = vpop.permute.xlu0 %1700
    %1702 = vrot.lane.b32.xlu0 %v1506, 16
    %v1703 = vpop.permute.xlu0 %1702
    %1704 = vrot.lane.b32.xlu0 %v1507, 16
    %v1705 = vpop.permute.xlu0 %1704
    %1706 = vrot.lane.b32.xlu0 %v1508, 16
    %v1707 = vpop.permute.xlu0 %1706
    %1708 = vrot.lane.b32.xlu0 %v1509, 16
    %v1709 = vpop.permute.xlu0 %1708
    %1710 = vrot.lane.b32.xlu0 %v1510, 16
    %v1711 = vpop.permute.xlu0 %1710
    %1712 = vrot.lane.b32.xlu0 %v1511, 16
    %v1713 = vpop.permute.xlu0 %1712
    %1714 = vrot.lane.b32.xlu0 %v1512, 16
    %v1715 = vpop.permute.xlu0 %1714
    %1716 = vrot.lane.b32.xlu0 %v1513, 16
    %v1717 = vpop.permute.xlu0 %1716
    %1718 = vrot.lane.b32.xlu0 %v1514, 16
    %v1719 = vpop.permute.xlu0 %1718
    %1720 = vrot.lane.b32.xlu0 %v1515, 16
    %v1721 = vpop.permute.xlu0 %1720
    %1722 = vrot.lane.b32.xlu0 %v1516, 16
    %v1723 = vpop.permute.xlu0 %1722
    %1724 = vrot.lane.b32.xlu0 %v1517, 16
    %v1725 = vpop.permute.xlu0 %1724
    %1726 = vrot.lane.b32.xlu0 %v1518, 16
    %v1727 = vpop.permute.xlu0 %1726
    %1760 = vrot.lane.b32.xlu0 %v1519, 24
    %v1761 = vpop.permute.xlu0 %1760
    %1762 = vrot.lane.b32.xlu0 %v1520, 24
    %v1763 = vpop.permute.xlu0 %1762
    %1764 = vrot.lane.b32.xlu0 %v1521, 24
    %v1765 = vpop.permute.xlu0 %1764
    %1766 = vrot.lane.b32.xlu0 %v1522, 24
    %v1767 = vpop.permute.xlu0 %1766
    %1768 = vrot.lane.b32.xlu0 %v1523, 24
    %v1769 = vpop.permute.xlu0 %1768
    %1770 = vrot.lane.b32.xlu0 %v1524, 24
    %v1771 = vpop.permute.xlu0 %1770
    %1772 = vrot.lane.b32.xlu0 %v1525, 24
    %v1773 = vpop.permute.xlu0 %1772
    %1774 = vrot.lane.b32.xlu0 %v1526, 24
    %v1775 = vpop.permute.xlu0 %1774
    %1776 = vrot.lane.b32.xlu0 %v1527, 24
    %v1777 = vpop.permute.xlu0 %1776
    %1778 = vrot.lane.b32.xlu0 %v1528, 24
    %v1779 = vpop.permute.xlu0 %1778
    %1780 = vrot.lane.b32.xlu0 %v1529, 24
    %v1781 = vpop.permute.xlu0 %1780
    %1782 = vrot.lane.b32.xlu0 %v1530, 24
    %v1783 = vpop.permute.xlu0 %1782
    %1784 = vrot.lane.b32.xlu0 %v1531, 24
    %v1785 = vpop.permute.xlu0 %1784
    %1786 = vrot.lane.b32.xlu0 %v1532, 24
    %v1787 = vpop.permute.xlu0 %1786
    %1788 = vrot.lane.b32.xlu0 %v1533, 24
    %v1789 = vpop.permute.xlu0 %1788
    %1790 = vrot.lane.b32.xlu0 %v1534, 24
    %v1791 = vpop.permute.xlu0 %1790
    %1824 = vrot.lane.b32.xlu0 %v1535, 32
    %v1825 = vpop.permute.xlu0 %1824
    %1826 = vrot.lane.b32.xlu0 %v1536, 32
    %v1827 = vpop.permute.xlu0 %1826
    %1828 = vrot.lane.b32.xlu0 %v1537, 32
    %v1829 = vpop.permute.xlu0 %1828
    %1830 = vrot.lane.b32.xlu0 %v1538, 32
    %v1831 = vpop.permute.xlu0 %1830
    %1832 = vrot.lane.b32.xlu0 %v1539, 32
    %v1833 = vpop.permute.xlu0 %1832
    %1834 = vrot.lane.b32.xlu0 %v1540, 32
    %v1835 = vpop.permute.xlu0 %1834
    %1836 = vrot.lane.b32.xlu0 %v1541, 32
    %v1837 = vpop.permute.xlu0 %1836
    %1838 = vrot.lane.b32.xlu0 %v1542, 32
    %v1839 = vpop.permute.xlu0 %1838
    %1840 = vrot.lane.b32.xlu0 %v1543, 32
    %v1841 = vpop.permute.xlu0 %1840
    %1842 = vrot.lane.b32.xlu0 %v1544, 32
    %v1843 = vpop.permute.xlu0 %1842
    %1844 = vrot.lane.b32.xlu0 %v1545, 32
    %v1845 = vpop.permute.xlu0 %1844
    %1846 = vrot.lane.b32.xlu0 %v1546, 32
    %v1847 = vpop.permute.xlu0 %1846
    %1848 = vrot.lane.b32.xlu0 %v1547, 32
    %v1849 = vpop.permute.xlu0 %1848
    %1850 = vrot.lane.b32.xlu0 %v1548, 32
    %v1851 = vpop.permute.xlu0 %1850
    %1852 = vrot.lane.b32.xlu0 %v1549, 32
    %v1853 = vpop.permute.xlu0 %1852
    %1854 = vrot.lane.b32.xlu0 %v1550, 32
    %v1855 = vpop.permute.xlu0 %1854
    %1888 = vrot.lane.b32.xlu0 %v1551, 40
    %v1889 = vpop.permute.xlu0 %1888
    %1890 = vrot.lane.b32.xlu0 %v1552, 40
    %v1891 = vpop.permute.xlu0 %1890
    %1892 = vrot.lane.b32.xlu0 %v1553, 40
    %v1893 = vpop.permute.xlu0 %1892
    %1894 = vrot.lane.b32.xlu0 %v1554, 40
    %v1895 = vpop.permute.xlu0 %1894
    %1896 = vrot.lane.b32.xlu0 %v1555, 40
    %v1897 = vpop.permute.xlu0 %1896
    %1898 = vrot.lane.b32.xlu0 %v1556, 40
    %v1899 = vpop.permute.xlu0 %1898
    %1900 = vrot.lane.b32.xlu0 %v1557, 40
    %v1901 = vpop.permute.xlu0 %1900
    %1902 = vrot.lane.b32.xlu0 %v1558, 40
    %v1903 = vpop.permute.xlu0 %1902
    %1904 = vrot.lane.b32.xlu0 %v1559, 40
    %v1905 = vpop.permute.xlu0 %1904
    %1906 = vrot.lane.b32.xlu0 %v1560, 40
    %v1907 = vpop.permute.xlu0 %1906
    %1908 = vrot.lane.b32.xlu0 %v1561, 40
    %v1909 = vpop.permute.xlu0 %1908
    %1910 = vrot.lane.b32.xlu0 %v1562, 40
    %v1911 = vpop.permute.xlu0 %1910
    %1912 = vrot.lane.b32.xlu0 %v1563, 40
    %v1913 = vpop.permute.xlu0 %1912
    %1914 = vrot.lane.b32.xlu0 %v1564, 40
    %v1915 = vpop.permute.xlu0 %1914
    %1916 = vrot.lane.b32.xlu0 %v1565, 40
    %v1917 = vpop.permute.xlu0 %1916
    %1918 = vrot.lane.b32.xlu0 %v1566, 40
    %v1919 = vpop.permute.xlu0 %1918
    %1952 = vrot.lane.b32.xlu0 %v1568, 48
    %v1953 = vpop.permute.xlu0 %1952
    %1954 = vrot.lane.b32.xlu0 %v1569, 48
    %v1955 = vpop.permute.xlu0 %1954
    %1956 = vrot.lane.b32.xlu0 %v1570, 48
    %v1957 = vpop.permute.xlu0 %1956
    %1958 = vrot.lane.b32.xlu0 %v1571, 48
    %v1959 = vpop.permute.xlu0 %1958
    %1960 = vrot.lane.b32.xlu0 %v1572, 48
    %v1961 = vpop.permute.xlu0 %1960
    %1962 = vrot.lane.b32.xlu0 %v1573, 48
    %v1963 = vpop.permute.xlu0 %1962
    %1964 = vrot.lane.b32.xlu0 %v1574, 48
    %v1965 = vpop.permute.xlu0 %1964
    %1966 = vrot.lane.b32.xlu0 %v1575, 48
    %v1967 = vpop.permute.xlu0 %1966
    %1968 = vrot.lane.b32.xlu0 %v1576, 48
    %v1969 = vpop.permute.xlu0 %1968
    %1970 = vrot.lane.b32.xlu0 %v1577, 48
    %v1971 = vpop.permute.xlu0 %1970
    %1972 = vrot.lane.b32.xlu0 %v1578, 48
    %v1973 = vpop.permute.xlu0 %1972
    %1974 = vrot.lane.b32.xlu0 %v1579, 48
    %v1975 = vpop.permute.xlu0 %1974
    %1976 = vrot.lane.b32.xlu0 %v1580, 48
    %v1977 = vpop.permute.xlu0 %1976
    %1978 = vrot.lane.b32.xlu0 %v1581, 48
    %v1979 = vpop.permute.xlu0 %1978
    %1980 = vrot.lane.b32.xlu0 %v1582, 48
    %v1981 = vpop.permute.xlu0 %1980
    %1982 = vrot.lane.b32.xlu0 %v1583, 48
    %v1983 = vpop.permute.xlu0 %1982
    %2016 = vrot.lane.b32.xlu0 %v1584, 56
    %v2017 = vpop.permute.xlu0 %2016
    %2018 = vrot.lane.b32.xlu0 %v1585, 56
    %v2019 = vpop.permute.xlu0 %2018
    %2020 = vrot.lane.b32.xlu0 %v1586, 56
    %v2021 = vpop.permute.xlu0 %2020
    %2022 = vrot.lane.b32.xlu0 %v1587, 56
    %v2023 = vpop.permute.xlu0 %2022
    %2024 = vrot.lane.b32.xlu0 %v1588, 56
    %v2025 = vpop.permute.xlu0 %2024
    %2026 = vrot.lane.b32.xlu0 %v1589, 56
    %v2027 = vpop.permute.xlu0 %2026
    %2028 = vrot.lane.b32.xlu0 %v1590, 56
    %v2029 = vpop.permute.xlu0 %2028
    %2030 = vrot.lane.b32.xlu0 %v1591, 56
    %v2031 = vpop.permute.xlu0 %2030
    %2032 = vrot.lane.b32.xlu0 %v1592, 56
    %v2033 = vpop.permute.xlu0 %2032
    %2034 = vrot.lane.b32.xlu0 %v1593, 56
    %v2035 = vpop.permute.xlu0 %2034
    %2036 = vrot.lane.b32.xlu0 %v1594, 56
    %v2037 = vpop.permute.xlu0 %2036
    %2038 = vrot.lane.b32.xlu0 %v1595, 56
    %v2039 = vpop.permute.xlu0 %2038
    %2040 = vrot.lane.b32.xlu0 %v1596, 56
    %v2041 = vpop.permute.xlu0 %2040
    %2042 = vrot.lane.b32.xlu0 %v1597, 56
    %v2043 = vpop.permute.xlu0 %2042
    %2044 = vrot.lane.b32.xlu0 %v1598, 56
    %v2045 = vpop.permute.xlu0 %2044
    %2046 = vrot.lane.b32.xlu0 %v1599, 56
    %v2047 = vpop.permute.xlu0 %2046
    %2080 = vrot.lane.b32.xlu0 %v1600, 64
    %v2081 = vpop.permute.xlu0 %2080
    %2082 = vrot.lane.b32.xlu0 %v1601, 64
    %v2083 = vpop.permute.xlu0 %2082
    %2084 = vrot.lane.b32.xlu0 %v1602, 64
    %v2085 = vpop.permute.xlu0 %2084
    %2086 = vrot.lane.b32.xlu0 %v1603, 64
    %v2087 = vpop.permute.xlu0 %2086
    %2088 = vrot.lane.b32.xlu0 %v1604, 64
    %v2089 = vpop.permute.xlu0 %2088
    %2090 = vrot.lane.b32.xlu0 %v1605, 64
    %v2091 = vpop.permute.xlu0 %2090
    %2092 = vrot.lane.b32.xlu0 %v1606, 64
    %v2093 = vpop.permute.xlu0 %2092
    %2094 = vrot.lane.b32.xlu0 %v1607, 64
    %v2095 = vpop.permute.xlu0 %2094
    %2096 = vrot.lane.b32.xlu0 %v1608, 64
    %v2097 = vpop.permute.xlu0 %2096
    %2098 = vrot.lane.b32.xlu0 %v1609, 64
    %v2099 = vpop.permute.xlu0 %2098
    %2100 = vrot.lane.b32.xlu0 %v1610, 64
    %v2101 = vpop.permute.xlu0 %2100
    %2102 = vrot.lane.b32.xlu0 %v1611, 64
    %v2103 = vpop.permute.xlu0 %2102
    %2104 = vrot.lane.b32.xlu0 %v1612, 64
    %v2105 = vpop.permute.xlu0 %2104
    %2106 = vrot.lane.b32.xlu0 %v1613, 64
    %v2107 = vpop.permute.xlu0 %2106
    %2108 = vrot.lane.b32.xlu0 %v1614, 64
    %v2109 = vpop.permute.xlu0 %2108
    %2110 = vrot.lane.b32.xlu0 %v1615, 64
    %v2111 = vpop.permute.xlu0 %2110
    %v2128 = vsel %vm893, %v1471, %v1633
    %v2129 = vsel %vm893, %v1472, %v1635
    %v2130 = vsel %vm893, %v1473, %v1637
    %v2131 = vsel %vm893, %v1474, %v1639
    %v2132 = vsel %vm893, %v1475, %v1641
    %v2133 = vsel %vm893, %v1476, %v1643
    %v2134 = vsel %vm893, %v1477, %v1645
    %v2135 = vsel %vm893, %v1478, %v1647
    %v2136 = vsel %vm893, %v1479, %v1649
    %v2137 = vsel %vm893, %v1480, %v1651
    %v2138 = vsel %vm893, %v1481, %v1653
    %v2139 = vsel %vm893, %v1482, %v1655
    %v2140 = vsel %vm893, %v1483, %v1657
    %v2141 = vsel %vm893, %v1484, %v1659
    %v2142 = vsel %vm893, %v1485, %v1661
    %v2143 = vsel %vm893, %v1486, %v1663
    %v2144 = vsel %vm927, %v2128, %v1697
    %v2145 = vsel %vm927, %v2129, %v1699
    %v2146 = vsel %vm927, %v2130, %v1701
    %v2147 = vsel %vm927, %v2131, %v1703
    %v2148 = vsel %vm927, %v2132, %v1705
    %v2149 = vsel %vm927, %v2133, %v1707
    %v2150 = vsel %vm927, %v2134, %v1709
    %v2151 = vsel %vm927, %v2135, %v1711
    %v2152 = vsel %vm927, %v2136, %v1713
    %v2153 = vsel %vm927, %v2137, %v1715
    %v2154 = vsel %vm927, %v2138, %v1717
    %v2155 = vsel %vm927, %v2139, %v1719
    %v2156 = vsel %vm927, %v2140, %v1721
    %v2157 = vsel %vm927, %v2141, %v1723
    %v2158 = vsel %vm927, %v2142, %v1725
    %v2159 = vsel %vm927, %v2143, %v1727
    %v2160 = vsel %vm961, %v2144, %v1761
    %v2161 = vsel %vm961, %v2145, %v1763
    %v2162 = vsel %vm961, %v2146, %v1765
    %v2163 = vsel %vm961, %v2147, %v1767
    %v2164 = vsel %vm961, %v2148, %v1769
    %v2165 = vsel %vm961, %v2149, %v1771
    %v2166 = vsel %vm961, %v2150, %v1773
    %v2167 = vsel %vm961, %v2151, %v1775
    %v2168 = vsel %vm961, %v2152, %v1777
    %v2169 = vsel %vm961, %v2153, %v1779
    %v2170 = vsel %vm961, %v2154, %v1781
    %v2171 = vsel %vm961, %v2155, %v1783
    %v2172 = vsel %vm961, %v2156, %v1785
    %v2173 = vsel %vm961, %v2157, %v1787
    %v2174 = vsel %vm961, %v2158, %v1789
    %v2175 = vsel %vm961, %v2159, %v1791
    %v2176 = vsel %vm995, %v2160, %v1825
    %v2177 = vsel %vm995, %v2161, %v1827
    %v2178 = vsel %vm995, %v2162, %v1829
    %v2179 = vsel %vm995, %v2163, %v1831
    %v2180 = vsel %vm995, %v2164, %v1833
    %v2181 = vsel %vm995, %v2165, %v1835
    %v2182 = vsel %vm995, %v2166, %v1837
    %v2183 = vsel %vm995, %v2167, %v1839
    %v2184 = vsel %vm995, %v2168, %v1841
    %v2185 = vsel %vm995, %v2169, %v1843
    %v2186 = vsel %vm995, %v2170, %v1845
    %v2187 = vsel %vm995, %v2171, %v1847
    %v2188 = vsel %vm995, %v2172, %v1849
    %v2189 = vsel %vm995, %v2173, %v1851
    %v2190 = vsel %vm995, %v2174, %v1853
    %v2191 = vsel %vm995, %v2175, %v1855
    %vm2192 = vcmask 326656
    %v2193 = vsel %vm2192, %v2176, %v1889
    %v2194 = vsel %vm2192, %v2177, %v1891
    %v2195 = vsel %vm2192, %v2178, %v1893
    %v2196 = vsel %vm2192, %v2179, %v1895
    %v2197 = vsel %vm2192, %v2180, %v1897
    %v2198 = vsel %vm2192, %v2181, %v1899
    %v2199 = vsel %vm2192, %v2182, %v1901
    %v2200 = vsel %vm2192, %v2183, %v1903
    %v2201 = vsel %vm2192, %v2184, %v1905
    %v2202 = vsel %vm2192, %v2185, %v1907
    %v2203 = vsel %vm2192, %v2186, %v1909
    %v2204 = vsel %vm2192, %v2187, %v1911
    %v2205 = vsel %vm2192, %v2188, %v1913
    %v2206 = vsel %vm2192, %v2189, %v1915
    %v2207 = vsel %vm2192, %v2190, %v1917
    %v2208 = vsel %vm2192, %v2191, %v1919
    %vm2209 = vcmask 392192
    %v2210 = vsel %vm2209, %v2193, %v1953
    %v2211 = vsel %vm2209, %v2194, %v1955
    %v2212 = vsel %vm2209, %v2195, %v1957
    %v2213 = vsel %vm2209, %v2196, %v1959
    %v2214 = vsel %vm2209, %v2197, %v1961
    %v2215 = vsel %vm2209, %v2198, %v1963
    %v2216 = vsel %vm2209, %v2199, %v1965
    %v2217 = vsel %vm2209, %v2200, %v1967
    %v2218 = vsel %vm2209, %v2201, %v1969
    %v2219 = vsel %vm2209, %v2202, %v1971
    %v2220 = vsel %vm2209, %v2203, %v1973
    %v2221 = vsel %vm2209, %v2204, %v1975
    %v2222 = vsel %vm2209, %v2205, %v1977
    %v2223 = vsel %vm2209, %v2206, %v1979
    %v2224 = vsel %vm2209, %v2207, %v1981
    %v2225 = vsel %vm2209, %v2208, %v1983
    %vm2226 = vcmask 457728
    %v2227 = vsel %vm2226, %v2210, %v2017
    %v2228 = vsel %vm2226, %v2211, %v2019
    %v2229 = vsel %vm2226, %v2212, %v2021
    %v2230 = vsel %vm2226, %v2213, %v2023
    %v2231 = vsel %vm2226, %v2214, %v2025
    %v2232 = vsel %vm2226, %v2215, %v2027
    %v2233 = vsel %vm2226, %v2216, %v2029
    %v2234 = vsel %vm2226, %v2217, %v2031
    %v2235 = vsel %vm2226, %v2218, %v2033
    %v2236 = vsel %vm2226, %v2219, %v2035
    %v2237 = vsel %vm2226, %v2220, %v2037
    %v2238 = vsel %vm2226, %v2221, %v2039
    %v2239 = vsel %vm2226, %v2222, %v2041
    %v2240 = vsel %vm2226, %v2223, %v2043
    %v2241 = vsel %vm2226, %v2224, %v2045
    %v2242 = vsel %vm2226, %v2225, %v2047
    %vm2243 = vcmask 523264
    %v2244 = vsel %vm2243, %v2227, %v2081
    %v2245 = vsel %vm2243, %v2228, %v2083
    %v2246 = vsel %vm2243, %v2229, %v2085
    %v2247 = vsel %vm2243, %v2230, %v2087
    %v2248 = vsel %vm2243, %v2231, %v2089
    %v2249 = vsel %vm2243, %v2232, %v2091
    %v2250 = vsel %vm2243, %v2233, %v2093
    %v2251 = vsel %vm2243, %v2234, %v2095
    %v2252 = vsel %vm2243, %v2235, %v2097
    %v2253 = vsel %vm2243, %v2236, %v2099
    %v2254 = vsel %vm2243, %v2237, %v2101
    %v2255 = vsel %vm2243, %v2238, %v2103
    %v2256 = vsel %vm2243, %v2239, %v2105
    %v2257 = vsel %vm2243, %v2240, %v2107
    %v2258 = vsel %vm2243, %v2241, %v2109
    %v2259 = vsel %vm2243, %v2242, %v2111
    %v2260 = vld [vmem:[%s5] sm:$0xff]
    %v2261 = vld [vmem:[%s5 + $0x8] sm:$0xff]
    %v2262 = vld [vmem:[%s5 + $0x10] sm:$0xff]
    %v2263 = vld [vmem:[%s5 + $0x18] sm:$0xff]
    %v2264 = vld [vmem:[%s5 + $0x20] sm:$0xff]
    %v2265 = vld [vmem:[%s5 + $0x28] sm:$0xff]
    %v2266 = vld [vmem:[%s5 + $0x30] sm:$0xff]
    %v2267 = vld [vmem:[%s5 + $0x38] sm:$0xff]
    %v2268 = vld [vmem:[%s5 + $0x40] sm:$0xff]
    %v2269 = vld [vmem:[%s6] sm:$0x1]
    %v2271 = vlaneseq
    %v2272 = vshrl.u32 %v2271, 7
    %v2273 = vsub.s32 0, %v2272
    %v2274 = vrot.slane %v2269, %v2273
    %vm2276 = vcmask 588800
    %v2278 = vsel %vm2276, %v2244, 0
    %v2281 = vsel %vm2276, %v2245, 0
    %v2284 = vsel %vm2276, %v2246, 0
    %v2287 = vsel %vm2276, %v2247, 0
    %v2290 = vsel %vm2276, %v2248, 0
    %v2293 = vsel %vm2276, %v2249, 0
    %v2296 = vsel %vm2276, %v2250, 0
    %v2299 = vsel %vm2276, %v2251, 0
    %v2302 = vsel %vm2276, %v2252, 0
    %v2305 = vsel %vm2276, %v2253, 0
    %v2308 = vsel %vm2276, %v2254, 0
    %v2311 = vsel %vm2276, %v2255, 0
    %v2314 = vsel %vm2276, %v2256, 0
    %v2317 = vsel %vm2276, %v2257, 0
    %v2320 = vsel %vm2276, %v2258, 0
    %v2323 = vsel %vm2276, %v2259, 0
    %2325 = vmatprep.subr.mxu0 0.0
    %2326 = vmatpush1.msra.mxu0 %v2260
    %2327 = vmatprep.subr.mxu0 0.0
    %2328 = vmatpush1.msra.mxu0 %v2261
    %2329 = vmatprep.subr.mxu0 0.0
    %2330 = vmatpush1.msra.mxu0 %v2262
    %2331 = vmatprep.subr.mxu0 0.0
    %2332 = vmatpush1.msra.mxu0 %v2263
    %2333 = vmatprep.subr.mxu0 0.0
    %2334 = vmatpush1.msra.mxu0 %v2264
    %2335 = vmatprep.subr.mxu0 0.0
    %2336 = vmatpush1.msra.mxu0 %v2265
    %2337 = vmatprep.subr.mxu0 0.0
    %2338 = vmatpush1.msra.mxu0 %v2266
    %2339 = vmatprep.subr.mxu0 0.0
    %2340 = vmatpush1.msra.mxu0 %v2267
    %2341 = vmatprep.subr.mxu0 0.0
    %2342 = vmatpush1.msra.mxu0 %v2268
    %2343 = vmatprep.subr.mxu0 0.0
    %2344 = vmatpush1.msra.mxu0 0.0
    %2345 = vmatprep.subr.mxu0 0.0
    %2346 = vmatpush1.msra.mxu0 0.0
    %2347 = vmatprep.subr.mxu0 0.0
    %2348 = vmatpush1.msra.mxu0 0.0
    %2349 = vmatprep.subr.mxu0 0.0
    %2350 = vmatpush1.msra.mxu0 0.0
    %2351 = vmatprep.subr.mxu0 0.0
    %2352 = vmatpush1.msra.mxu0 0.0
    %2353 = vmatprep.subr.mxu0 0.0
    %2354 = vmatpush1.msra.mxu0 0.0
    %2355 = vmatprep.subr.mxu0 0.0
    %2356 = vmatpush1.msra.mxu0 0.0
    %2357 = vmatprep.subr.mxu0 0.0
    %2358 = vmatpush1.msra.mxu0 0.0
    %2359 = vmatprep.subr.mxu0 0.0
    %2360 = vmatpush1.msra.mxu0 0.0
    %2361 = vmatprep.subr.mxu0 0.0
    %2362 = vmatpush1.msra.mxu0 0.0
    %2363 = vmatprep.subr.mxu0 0.0
    %2364 = vmatpush1.msra.mxu0 0.0
    %2365 = vmatprep.subr.mxu0 0.0
    %2366 = vmatpush1.msra.mxu0 0.0
    %2367 = vmatprep.subr.mxu0 0.0
    %2368 = vmatpush1.msra.mxu0 0.0
    %2369 = vmatprep.subr.mxu0 0.0
    %2370 = vmatpush1.msra.mxu0 0.0
    %2371 = vmatprep.subr.mxu0 0.0
    %2372 = vmatpush1.msra.mxu0 0.0
    %2373 = vmatprep.subr.mxu0 0.0
    %2374 = vmatpush1.msra.mxu0 0.0
    %2375 = vmatprep.subr.mxu0 0.0
    %2376 = vmatpush1.msra.mxu0 0.0
    %2377 = vmatprep.subr.mxu0 0.0
    %2378 = vmatpush1.msra.mxu0 0.0
    %2379 = vmatprep.subr.mxu0 0.0
    %2380 = vmatpush1.msra.mxu0 0.0
    %2381 = vmatprep.subr.mxu0 0.0
    %2382 = vmatpush1.msra.mxu0 0.0
    %2383 = vmatprep.subr.mxu0 0.0
    %2384 = vmatpush1.msra.mxu0 0.0
    %2385 = vmatprep.subr.mxu0 0.0
    %2386 = vmatpush1.msra.mxu0 0.0
    %2387 = vmatprep.subr.mxu0 0.0
    %2388 = vmatpush1.msra.mxu0 0.0
    %2389 = vmatprep.mubr.f32.mxu0 0.0
    %2390 = vmatmul.mubr.f32.gmra.mrb[0].mxu0 %v2278
    %v2391 = vpop.f32.mrb[0].mxu0
    %v2392 = vadd.f32 %v2274, %v2391
    %v2393 = vpop.f32.mrb[0].mxu0
    %2394 = vmatprep.mubr.f32.mxu0 0.0
    %2395 = vmatmul.mubr.f32.gmra.mrb[0].mxu0 %v2281
    %v2396 = vpop.f32.mrb[0].mxu0
    %v2397 = vadd.f32 %v2274, %v2396
    %v2398 = vpop.f32.mrb[0].mxu0
    %2399 = vmatprep.mubr.f32.mxu0 0.0
    %2400 = vmatmul.mubr.f32.gmra.mrb[0].mxu0 %v2284
    %v2401 = vpop.f32.mrb[0].mxu0
    %v2402 = vadd.f32 %v2274, %v2401
    %v2403 = vpop.f32.mrb[0].mxu0
    %2404 = vmatprep.mubr.f32.mxu0 0.0
    %2405 = vmatmul.mubr.f32.gmra.mrb[0].mxu0 %v2287
    %v2406 = vpop.f32.mrb[0].mxu0
    %v2407 = vadd.f32 %v2274, %v2406
    %v2408 = vpop.f32.mrb[0].mxu0
    %2409 = vmatprep.mubr.f32.mxu0 0.0
    %2410 = vmatmul.mubr.f32.gmra.mrb[0].mxu0 %v2290
    %v2411 = vpop.f32.mrb[0].mxu0
    %v2412 = vadd.f32 %v2274, %v2411
    %v2413 = vpop.f32.mrb[0].mxu0
    %2414 = vmatprep.mubr.f32.mxu0 0.0
    %2415 = vmatmul.mubr.f32.gmra.mrb[0].mxu0 %v2293
    %v2416 = vpop.f32.mrb[0].mxu0
    %v2417 = vadd.f32 %v2274, %v2416
    %v2418 = vpop.f32.mrb[0].mxu0
    %2419 = vmatprep.mubr.f32.mxu0 0.0
    %2420 = vmatmul.mubr.f32.gmra.mrb[0].mxu0 %v2296
    %v2421 = vpop.f32.mrb[0].mxu0
    %v2422 = vadd.f32 %v2274, %v2421
    %v2423 = vpop.f32.mrb[0].mxu0
    %2424 = vmatprep.mubr.f32.mxu0 0.0
    %2425 = vmatmul.mubr.f32.gmra.mrb[0].mxu0 %v2299
    %v2426 = vpop.f32.mrb[0].mxu0
    %v2427 = vadd.f32 %v2274, %v2426
    %v2428 = vpop.f32.mrb[0].mxu0
    %2429 = vmatprep.mubr.f32.mxu0 0.0
    %2430 = vmatmul.mubr.f32.gmra.mrb[0].mxu0 %v2302
    %v2431 = vpop.f32.mrb[0].mxu0
    %v2432 = vadd.f32 %v2274, %v2431
    %v2433 = vpop.f32.mrb[0].mxu0
    %2434 = vmatprep.mubr.f32.mxu0 0.0
    %2435 = vmatmul.mubr.f32.gmra.mrb[0].mxu0 %v2305
    %v2436 = vpop.f32.mrb[0].mxu0
    %v2437 = vadd.f32 %v2274, %v2436
    %v2438 = vpop.f32.mrb[0].mxu0
    %2439 = vmatprep.mubr.f32.mxu0 0.0
    %2440 = vmatmul.mubr.f32.gmra.mrb[0].mxu0 %v2308
    %v2441 = vpop.f32.mrb[0].mxu0
    %v2442 = vadd.f32 %v2274, %v2441
    %v2443 = vpop.f32.mrb[0].mxu0
    %2444 = vmatprep.mubr.f32.mxu0 0.0
    %2445 = vmatmul.mubr.f32.gmra.mrb[0].mxu0 %v2311
    %v2446 = vpop.f32.mrb[0].mxu0
    %v2447 = vadd.f32 %v2274, %v2446
    %v2448 = vpop.f32.mrb[0].mxu0
    %2449 = vmatprep.mubr.f32.mxu0 0.0
    %2450 = vmatmul.mubr.f32.gmra.mrb[0].mxu0 %v2314
    %v2451 = vpop.f32.mrb[0].mxu0
    %v2452 = vadd.f32 %v2274, %v2451
    %v2453 = vpop.f32.mrb[0].mxu0
    %2454 = vmatprep.mubr.f32.mxu0 0.0
    %2455 = vmatmul.mubr.f32.gmra.mrb[0].mxu0 %v2317
    %v2456 = vpop.f32.mrb[0].mxu0
    %v2457 = vadd.f32 %v2274, %v2456
    %v2458 = vpop.f32.mrb[0].mxu0
    %2459 = vmatprep.mubr.f32.mxu0 0.0
    %2460 = vmatmul.mubr.f32.gmra.mrb[0].mxu0 %v2320
    %v2461 = vpop.f32.mrb[0].mxu0
    %v2462 = vadd.f32 %v2274, %v2461
    %v2463 = vpop.f32.mrb[0].mxu0
    %2464 = vmatprep.mubr.f32.mxu0 0.0
    %2465 = vmatmul.mubr.f32.gmra.mrb[0].mxu0 %v2323
    %v2466 = vpop.f32.mrb[0].mxu0
    %v2467 = vadd.f32 %v2274, %v2466
    %v2468 = vpop.f32.mrb[0].mxu0
    %2469 = vdwg.mxu0
    %v2470 = vld [vmem:[%s7] sm:$0x1]
    %v2471 = vld [vmem:[%s8] sm:$0x1]
    %v2472 = vsel %vm893, %v2392, 0.0
    %v2473 = vsel %vm893, %v2397, 0.0
    %v2474 = vadd.f32 %v2472, %v2473
    %v2475 = vsel %vm893, %v2402, 0.0
    %v2476 = vadd.f32 %v2474, %v2475
    %v2477 = vsel %vm893, %v2407, 0.0
    %v2478 = vadd.f32 %v2476, %v2477
    %v2479 = vsel %vm893, %v2412, 0.0
    %v2480 = vadd.f32 %v2478, %v2479
    %v2481 = vsel %vm893, %v2417, 0.0
    %v2482 = vadd.f32 %v2480, %v2481
    %v2483 = vsel %vm893, %v2422, 0.0
    %v2484 = vadd.f32 %v2482, %v2483
    %v2485 = vsel %vm893, %v2427, 0.0
    %v2486 = vadd.f32 %v2484, %v2485
    %v2487 = vsel %vm893, %v2432, 0.0
    %v2488 = vadd.f32 %v2486, %v2487
    %v2489 = vsel %vm893, %v2437, 0.0
    %v2490 = vadd.f32 %v2488, %v2489
    %v2491 = vsel %vm893, %v2442, 0.0
    %v2492 = vadd.f32 %v2490, %v2491
    %v2493 = vsel %vm893, %v2447, 0.0
    %v2494 = vadd.f32 %v2492, %v2493
    %v2495 = vsel %vm893, %v2452, 0.0
    %v2496 = vadd.f32 %v2494, %v2495
    %v2497 = vsel %vm893, %v2457, 0.0
    %v2498 = vadd.f32 %v2496, %v2497
    %v2499 = vsel %vm893, %v2462, 0.0
    %v2500 = vadd.f32 %v2498, %v2499
    %v2501 = vsel %vm893, %v2467, 0.0
    %v2502 = vadd.f32 %v2500, %v2501
    %v2503 = vrot.slane %v2502, 4
    %v2504 = vadd.f32 %v2502, %v2503
    %v2505 = vrot.slane %v2504, 2
    %v2506 = vadd.f32 %v2504, %v2505
    %v2507 = vrot.slane %v2506, 1
    %v2508 = vadd.f32 %v2506, %v2507
    %v2509 = vmul.f32 %v2508, %v1261
    %v2510 = vmul.f32 %v2392, %v2392
    %v2511 = vmul.f32 %v2397, %v2397
    %v2512 = vmul.f32 %v2402, %v2402
    %v2513 = vmul.f32 %v2407, %v2407
    %v2514 = vmul.f32 %v2412, %v2412
    %v2515 = vmul.f32 %v2417, %v2417
    %v2516 = vmul.f32 %v2422, %v2422
    %v2517 = vmul.f32 %v2427, %v2427
    %v2518 = vmul.f32 %v2432, %v2432
    %v2519 = vmul.f32 %v2437, %v2437
    %v2520 = vmul.f32 %v2442, %v2442
    %v2521 = vmul.f32 %v2447, %v2447
    %v2522 = vmul.f32 %v2452, %v2452
    %v2523 = vmul.f32 %v2457, %v2457
    %v2524 = vmul.f32 %v2462, %v2462
    %v2525 = vmul.f32 %v2467, %v2467
    %v2526 = vsel %vm893, %v2510, 0.0
    %v2527 = vsel %vm893, %v2511, 0.0
    %v2528 = vadd.f32 %v2526, %v2527
    %v2529 = vsel %vm893, %v2512, 0.0
    %v2530 = vadd.f32 %v2528, %v2529
    %v2531 = vsel %vm893, %v2513, 0.0
    %v2532 = vadd.f32 %v2530, %v2531
    %v2533 = vsel %vm893, %v2514, 0.0
    %v2534 = vadd.f32 %v2532, %v2533
    %v2535 = vsel %vm893, %v2515, 0.0
    %v2536 = vadd.f32 %v2534, %v2535
    %v2537 = vsel %vm893, %v2516, 0.0
    %v2538 = vadd.f32 %v2536, %v2537
    %v2539 = vsel %vm893, %v2517, 0.0
    %v2540 = vadd.f32 %v2538, %v2539
    %v2541 = vsel %vm893, %v2518, 0.0
    %v2542 = vadd.f32 %v2540, %v2541
    %v2543 = vsel %vm893, %v2519, 0.0
    %v2544 = vadd.f32 %v2542, %v2543
    %v2545 = vsel %vm893, %v2520, 0.0
    %v2546 = vadd.f32 %v2544, %v2545
    %v2547 = vsel %vm893, %v2521, 0.0
    %v2548 = vadd.f32 %v2546, %v2547
    %v2549 = vsel %vm893, %v2522, 0.0
    %v2550 = vadd.f32 %v2548, %v2549
    %v2551 = vsel %vm893, %v2523, 0.0
    %v2552 = vadd.f32 %v2550, %v2551
    %v2553 = vsel %vm893, %v2524, 0.0
    %v2554 = vadd.f32 %v2552, %v2553
    %v2555 = vsel %vm893, %v2525, 0.0
    %v2556 = vadd.f32 %v2554, %v2555
    %v2557 = vrot.slane %v2556, 4
    %v2558 = vadd.f32 %v2556, %v2557
    %v2559 = vrot.slane %v2558, 2
    %v2560 = vadd.f32 %v2558, %v2559
    %v2561 = vrot.slane %v2560, 1
    %v2562 = vadd.f32 %v2560, %v2561
    %v2563 = vmul.f32 %v2562, %v1261
    %v2564 = vmul.f32 %v2509, %v2509
    %v2565 = vsub.f32 %v2563, %v2564
    %v2566 = vadd.f32 %v2565, 1e-05
    %v2567 = vrsqrt.pop %v2566
    %v2568 = vsub.f32 %v2392, %v2509
    %v2569 = vsub.f32 %v2397, %v2509
    %v2570 = vsub.f32 %v2402, %v2509
    %v2571 = vsub.f32 %v2407, %v2509
    %v2572 = vsub.f32 %v2412, %v2509
    %v2573 = vsub.f32 %v2417, %v2509
    %v2574 = vsub.f32 %v2422, %v2509
    %v2575 = vsub.f32 %v2427, %v2509
    %v2576 = vsub.f32 %v2432, %v2509
    %v2577 = vsub.f32 %v2437, %v2509
    %v2578 = vsub.f32 %v2442, %v2509
    %v2579 = vsub.f32 %v2447, %v2509
    %v2580 = vsub.f32 %v2452, %v2509
    %v2581 = vsub.f32 %v2457, %v2509
    %v2582 = vsub.f32 %v2462, %v2509
    %v2583 = vsub.f32 %v2467, %v2509
    %v2584 = vmul.f32 %v2568, %v2567
    %v2585 = vmul.f32 %v2569, %v2567
    %v2586 = vmul.f32 %v2570, %v2567
    %v2587 = vmul.f32 %v2571, %v2567
    %v2588 = vmul.f32 %v2572, %v2567
    %v2589 = vmul.f32 %v2573, %v2567
    %v2590 = vmul.f32 %v2574, %v2567
    %v2591 = vmul.f32 %v2575, %v2567
    %v2592 = vmul.f32 %v2576, %v2567
    %v2593 = vmul.f32 %v2577, %v2567
    %v2594 = vmul.f32 %v2578, %v2567
    %v2595 = vmul.f32 %v2579, %v2567
    %v2596 = vmul.f32 %v2580, %v2567
    %v2597 = vmul.f32 %v2581, %v2567
    %v2598 = vmul.f32 %v2582, %v2567
    %v2599 = vmul.f32 %v2583, %v2567
    %v2601 = vlaneseq
    %v2602 = vshrl.u32 %v2601, 7
    %v2603 = vsub.s32 0, %v2602
    %v2604 = vrot.slane %v2470, %v2603
    %v2606 = vmul.f32 %v2584, %v2604
    %v2607 = vmul.f32 %v2585, %v2604
    %v2608 = vmul.f32 %v2586, %v2604
    %v2609 = vmul.f32 %v2587, %v2604
    %v2610 = vmul.f32 %v2588, %v2604
    %v2611 = vmul.f32 %v2589, %v2604
    %v2612 = vmul.f32 %v2590, %v2604
    %v2613 = vmul.f32 %v2591, %v2604
    %v2614 = vmul.f32 %v2592, %v2604
    %v2615 = vmul.f32 %v2593, %v2604
    %v2616 = vmul.f32 %v2594, %v2604
    %v2617 = vmul.f32 %v2595, %v2604
    %v2618 = vmul.f32 %v2596, %v2604
    %v2619 = vmul.f32 %v2597, %v2604
    %v2620 = vmul.f32 %v2598, %v2604
    %v2621 = vmul.f32 %v2599, %v2604
    %v2623 = vlaneseq
    %v2624 = vshrl.u32 %v2623, 7
    %v2625 = vsub.s32 0, %v2624
    %v2626 = vrot.slane %v2471, %v2625
    %v2628 = vadd.f32 %v2606, %v2626
    %v2629 = vadd.f32 %v2607, %v2626
    %v2630 = vadd.f32 %v2608, %v2626
    %v2631 = vadd.f32 %v2609, %v2626
    %v2632 = vadd.f32 %v2610, %v2626
    %v2633 = vadd.f32 %v2611, %v2626
    %v2634 = vadd.f32 %v2612, %v2626
    %v2635 = vadd.f32 %v2613, %v2626
    %v2636 = vadd.f32 %v2614, %v2626
    %v2637 = vadd.f32 %v2615, %v2626
    %v2638 = vadd.f32 %v2616, %v2626
    %v2639 = vadd.f32 %v2617, %v2626
    %v2640 = vadd.f32 %v2618, %v2626
    %v2641 = vadd.f32 %v2619, %v2626
    %v2642 = vadd.f32 %v2620, %v2626
    %v2643 = vadd.f32 %v2621, %v2626
    %v2644 = vmax.f32 %v2628, 0.0
    %v2645 = vmax.f32 %v2629, 0.0
    %v2646 = vmax.f32 %v2630, 0.0
    %v2647 = vmax.f32 %v2631, 0.0
    %v2648 = vmax.f32 %v2632, 0.0
    %v2649 = vmax.f32 %v2633, 0.0
    %v2650 = vmax.f32 %v2634, 0.0
    %v2651 = vmax.f32 %v2635, 0.0
    %v2652 = vmax.f32 %v2636, 0.0
    %v2653 = vmax.f32 %v2637, 0.0
    %v2654 = vmax.f32 %v2638, 0.0
    %v2655 = vmax.f32 %v2639, 0.0
    %v2656 = vmax.f32 %v2640, 0.0
    %v2657 = vmax.f32 %v2641, 0.0
    %v2658 = vmax.f32 %v2642, 0.0
    %v2659 = vmax.f32 %v2643, 0.0
    %2660 = vst.msk [vmem:[#allocation4] sm:$0xff] %vm893, %v2644
    %2661 = vst.msk [vmem:[#allocation4 + $0x8] sm:$0xff] %vm893, %v2645
    %2662 = vst.msk [vmem:[#allocation4 + $0x10] sm:$0xff] %vm893, %v2646
    %2663 = vst.msk [vmem:[#allocation4 + $0x18] sm:$0xff] %vm893, %v2647
    %2664 = vst.msk [vmem:[#allocation4 + $0x20] sm:$0xff] %vm893, %v2648
    %2665 = vst.msk [vmem:[#allocation4 + $0x28] sm:$0xff] %vm893, %v2649
    %2666 = vst.msk [vmem:[#allocation4 + $0x30] sm:$0xff] %vm893, %v2650
    %2667 = vst.msk [vmem:[#allocation4 + $0x38] sm:$0xff] %vm893, %v2651
    %2668 = vst.msk [vmem:[#allocation4 + $0x40] sm:$0xff] %vm893, %v2652
    %2669 = vst.msk [vmem:[#allocation4 + $0x48] sm:$0xff] %vm893, %v2653
    %2670 = vst.msk [vmem:[#allocation4 + $0x50] sm:$0xff] %vm893, %v2654
    %2671 = vst.msk [vmem:[#allocation4 + $0x58] sm:$0xff] %vm893, %v2655
    %2672 = vst.msk [vmem:[#allocation4 + $0x60] sm:$0xff] %vm893, %v2656
    %2673 = vst.msk [vmem:[#allocation4 + $0x68] sm:$0xff] %vm893, %v2657
    %2674 = vst.msk [vmem:[#allocation4 + $0x70] sm:$0xff] %vm893, %v2658
    %2675 = vst.msk [vmem:[#allocation4 + $0x78] sm:$0xff] %vm893, %v2659
    // Predicated region
    $region38: #{down_forward.1} parent=1 // pred_check
      _
    $region39: #{down_forward.1} parent=1 // pred_check_branch
      %2677 = sbr.rel (0) target = $region41
    $region40: #{down_forward.1} parent=1 // pred_region
      %s2679 = ssub.s32 2048, 2048
      %2680 = vsyncadd [#allocation5], %s2679
      %s2681 = sshll.u32 [#allocation4], 4
      %s2682 = int_to_ptr.vmem [resolvable:$true] %s2681
      %2687 = dma.vmem_to_hbm [thread:$0]  %s2682, 2048, %s9, [#allocation5], 128, 128, 8
    $region41: #{down_forward.1} parent=1 // pred_fallthru
      _
    // Predicated region
    $region42: #{down_forward.1} parent=1 // pred_check
      _
    $region43: #{down_forward.1} parent=1 // pred_check_branch
      %2689 = sbr.rel (0) target = $region45
    $region44: #{down_forward.1} parent=1 // pred_region
      %2690 = dma.done [#allocation5], 2048
    $region45: #{down_forward.1} parent=1 // pred_fallthru
      _
    %2691 = vsyncpa [#allocation5], 1

</llo_original>
